<compile_context>
chip_gen: v5e
topology: v5e:2x2
jax: 0.10.0
libtpu: 0.0.40
codegen_flags: <defaults>
</compile_context>

<pallas_src>
import math
import jax
import jax.numpy as jnp
from jax.experimental import pallas as pl
from jax.experimental.pallas import tpu as pltpu


def _round_up(x: int, m: int) -> int:
    return ((x + m - 1) // m) * m


def _ceil_div(a: int, b: int) -> int:
    return -(-a // b)


# ----------------------------------------------------------------------------
# Kernel
# ----------------------------------------------------------------------------
def sae_forward_kernel(x_ref,
                       w1, b1, w2, b2, w3, b3,      # encoder
                       w4, b4, w5, b5, w6, b6,      # decoder
                       out_ref):
    """Fused encoder+decoder forward for one batch tile.

    x_ref:  [TB, state_dim] f32 tile of the raw input batch
    w*:     [in, out]       bf16 weights, resident in VMEM across grid steps
    b*:     [1,  out]       f32 biases
    out_ref:[TB, D_pad]     lane-dense (128-wide) output slab
    """

    def hidden_layer(a_bf16, w_ref, b_ref):
        # MXU matmul with f32 accumulation, bias add on the VPU, then the
        # sigmoid via its tanh form (one EUP op, no divide), evaluated in
        # bf16 -- the bf16 cast doubles as the cast for the next matmul.
        z = jnp.dot(a_bf16, w_ref[...], preferred_element_type=jnp.float32)
        z = (z + b_ref[...]).astype(jnp.bfloat16)
        return 0.5 * jnp.tanh(0.5 * z) + 0.5        # stays bf16 (weak scalars)

    a = x_ref[...].astype(jnp.bfloat16)             # in-kernel bf16 cast

    # encoder: state_dim -> 512 -> 256 -> H_pad
    a = hidden_layer(a, w1, b1)
    a = hidden_layer(a, w2, b2)
    a = hidden_layer(a, w3, b3)   # encoding; padded hash lanes give 0.5 but
                                  # the matching (zero) rows of W4 kill them
    # decoder: H_pad -> 256 -> 512 -> D_pad
    a = hidden_layer(a, w4, b4)
    a = hidden_layer(a, w5, b5)

    # final layer: keep the activation in f32 for output fidelity
    z = jnp.dot(a, w6[...], preferred_element_type=jnp.float32) + b6[...]
    out_ref[...] = (0.5 * jnp.tanh(0.5 * z) + 0.5).astype(out_ref.dtype)


# ----------------------------------------------------------------------------
# Parameter prep (padding + bf16 cast), done once outside the kernel
# ----------------------------------------------------------------------------
def init_params(state_dimension: int, hash_length: int, key):
    """PyTorch-style uniform(-1/sqrt(fan_in)) init, W stored as [in, out]."""
    dims = [(state_dimension, 512), (512, 256), (256, hash_length),
            (hash_length, 256), (256, 512), (512, state_dimension)]
    params = []
    for (fan_in, fan_out) in dims:
        key, kw, kb = jax.random.split(key, 3)
        bound = 1.0 / math.sqrt(fan_in)
        w = jax.random.uniform(kw, (fan_in, fan_out), jnp.float32, -bound, bound)
        b = jax.random.uniform(kb, (1, fan_out), jnp.float32, -bound, bound)
        params.append((w, b))
    return params


def pad_params(params, state_dimension: int, hash_length: int):
    """Zero-pad the narrow OUTPUT dims to 128 lanes; weights -> bf16.

    W1 keeps its raw [state_dim, 512] shape (inputs need no lane padding);
    the hash bottleneck and the final output are padded to 128 lanes so every
    matmul output and the final HBM store are lane-dense.
    """
    D_pad = _round_up(state_dimension, 128)
    H_pad = _round_up(hash_length, 128)
    dims_pad = [(state_dimension, 512), (512, 256), (256, H_pad),
                (H_pad, 256), (256, 512), (512, D_pad)]
    padded = []
    for (w, b), (fip, fop) in zip(params, dims_pad):
        fi, fo = w.shape
        wp = jnp.zeros((fip, fop), jnp.bfloat16).at[:fi, :fo].set(
            w.astype(jnp.bfloat16))
        bp = jnp.zeros((1, fop), jnp.float32).at[:, :fo].set(b)
        padded.append((wp, bp))
    return padded


# ----------------------------------------------------------------------------
# Batch tiling
# ----------------------------------------------------------------------------
def _choose_batch_tiling(B: int, *, tb_max: int = 1024):
    """Pick (TB, B_pad) such that:
       * TB is a sublane multiple (8) and capped at tb_max (512-1024 keeps the
         per-step MXU work well above the ~0.35 us fixed pipeline overhead),
       * the grid has >= 2 (and an even number of) steps whenever the batch
         allows it, so both v7x TensorCores get balanced work,
       * batch-padding waste is bounded by the 8-row rounding, not by TB.
    """
    B8 = _round_up(B, 8)
    n_tiles = max(1, _ceil_div(B8, tb_max))
    if B8 >= 16:
        n_tiles = max(n_tiles, 2)
    if n_tiles > 1 and n_tiles % 2:
        n_tiles += 1
    TB = _round_up(_ceil_div(B8, n_tiles), 8)
    return TB, n_tiles * TB


# ----------------------------------------------------------------------------
# Wrapper
# ----------------------------------------------------------------------------
def state_autoencoder_forward(state, padded_params, *, tb_max: int = 1024,
                              out_dtype=jnp.float32):
    """state: [B, state_dim] f32.  padded_params: output of pad_params().

    out_dtype=jnp.bfloat16 halves output writeback if downstream allows it.
    """
    B, D = state.shape
    D_pad = padded_params[-1][0].shape[1]       # 128-padded output width

    TB, B_pad = _choose_batch_tiling(B, tb_max=tb_max)

    x = state.astype(jnp.float32)
    if B_pad != B:                               # cheap row-only padding
        x = jnp.zeros((B_pad, D), jnp.float32).at[:B].set(x)

    flat = [x]
    for w, b in padded_params:
        flat += [w, b]

    def resident_spec(shape):
        nd = len(shape)
        # Constant index map: weights/biases stay resident in VMEM across
        # grid steps; Pallas skips the re-DMA since the block index never
        # changes (no need for pipeline_mode tweaks at this footprint).
        return pl.BlockSpec(shape, lambda i, _nd=nd: (0,) * _nd)

    in_specs = [pl.BlockSpec((TB, D), lambda i: (i, 0))]
    in_specs += [resident_spec(a.shape)
                 for w, b in padded_params for a in (w, b)]

    # Advisory cost hint for XLA's scheduler.
    macs = sum(int(w.shape[0]) * int(w.shape[1]) for w, _ in padded_params)
    n_act = sum(int(w.shape[1]) for w, _ in padded_params)
    weight_bytes = sum(w.size * w.dtype.itemsize + b.size * b.dtype.itemsize
                       for w, b in padded_params)
    cost = pl.CostEstimate(
        flops=2 * B_pad * macs,
        transcendentals=B_pad * n_act,
        bytes_accessed=weight_bytes
        + x.size * x.dtype.itemsize
        + B_pad * D_pad * jnp.dtype(out_dtype).itemsize)

    out = pl.pallas_call(
        sae_forward_kernel,
        out_shape=jax.ShapeDtypeStruct((B_pad, D_pad), out_dtype),
        grid=(B_pad // TB,),
        in_specs=in_specs,
        out_specs=pl.BlockSpec((TB, D_pad), lambda i: (i, 0)),
        compiler_params=pltpu.CompilerParams(
            dimension_semantics=("parallel",),
            # TB up to 1024 needs ~12 MiB of scoped VMEM; 48 MiB clears v5e's
            # 16 MiB default while staying under v7x's 64 MiB physical VMEM.
            vmem_limit_bytes=48 * 1024 * 1024),
        cost_estimate=cost,
    )(*flat)

    return out[:B, :D]


def reference_forward(state, padded_params, D):
    """Pure-JAX reference mirroring the kernel arithmetic (bf16 W, f32 acc,
    bf16 tanh-form sigmoid on hidden layers, f32 on the last)."""
    a = state.astype(jnp.bfloat16)
    n = len(padded_params)
    for idx, (w, b) in enumerate(padded_params):
        z = jnp.dot(a, w, preferred_element_type=jnp.float32) + b
        if idx + 1 < n:
            z = z.astype(jnp.bfloat16)
        a = 0.5 * jnp.tanh(0.5 * z) + 0.5
    return a[:, :D].astype(jnp.float32)


if __name__ == "__main__":
    state_dimension = 32
    hash_length = 16
    batch = 32                               # -> TB=16, grid=(2,) (dual-TC path)

    key = jax.random.PRNGKey(0)
    key, kx = jax.random.split(key)
    state = jax.random.normal(kx, (batch, state_dimension), jnp.float32)

    params = init_params(state_dimension, hash_length, key)
    padded = pad_params(params, state_dimension, hash_length)

    recovered = state_autoencoder_forward(state, padded)
    recovered = jax.block_until_ready(recovered)

    ref = reference_forward(state, padded, state_dimension)
    assert recovered.shape == (batch, state_dimension)
    max_err = float(jnp.max(jnp.abs(recovered - ref)))
    assert jnp.allclose(recovered, ref, atol=2e-2, rtol=2e-2), max_err

    # TODO(synk): update()/exploration_bonus() involve the Adam optimizer, RNG
    # jitter and the lock-guarded shared hash-count table; only the forward
    # pass is kernelized (any weight update must re-run pad_params so the
    # padded rows/cols stay exactly zero).
    print("KERNEL_OK")
</pallas_src>

<mosaic_0001>
module attributes {stable_mosaic.version = 11 : i64} {
  func.func @sae_forward_kernel(%arg0: i32, %arg1: memref<16x32xf32, #tpu.memory_space<vmem>>, %arg2: memref<32x512xbf16, #tpu.memory_space<vmem>>, %arg3: memref<1x512xf32, #tpu.memory_space<vmem>>, %arg4: memref<512x256xbf16, #tpu.memory_space<vmem>>, %arg5: memref<1x256xf32, #tpu.memory_space<vmem>>, %arg6: memref<256x128xbf16, #tpu.memory_space<vmem>>, %arg7: memref<1x128xf32, #tpu.memory_space<vmem>>, %arg8: memref<128x256xbf16, #tpu.memory_space<vmem>>, %arg9: memref<1x256xf32, #tpu.memory_space<vmem>>, %arg10: memref<256x512xbf16, #tpu.memory_space<vmem>>, %arg11: memref<1x512xf32, #tpu.memory_space<vmem>>, %arg12: memref<512x128xbf16, #tpu.memory_space<vmem>>, %arg13: memref<1x128xf32, #tpu.memory_space<vmem>>, %arg14: memref<16x128xf32, #tpu.memory_space<vmem>>) attributes {dimension_semantics = [#tpu.dimension_semantics<parallel>], iteration_bounds = array<i64: 2>, scalar_prefetch = 0 : i64, scratch_operands = 0 : i64, tpu.core_type = #tpu.core_type<tc>, window_params = [{transform_indices = @transform_0, window_bounds = array<i64: 16, 32>}, {pipeline_mode = #tpu.pipeline_mode<synchronous>, transform_indices = @transform_1, window_bounds = array<i64: 32, 512>}, {pipeline_mode = #tpu.pipeline_mode<synchronous>, transform_indices = @transform_2, window_bounds = array<i64: 1, 512>}, {pipeline_mode = #tpu.pipeline_mode<synchronous>, transform_indices = @transform_3, window_bounds = array<i64: 512, 256>}, {pipeline_mode = #tpu.pipeline_mode<synchronous>, transform_indices = @transform_4, window_bounds = array<i64: 1, 256>}, {pipeline_mode = #tpu.pipeline_mode<synchronous>, transform_indices = @transform_5, window_bounds = array<i64: 256, 128>}, {pipeline_mode = #tpu.pipeline_mode<synchronous>, transform_indices = @transform_6, window_bounds = array<i64: 1, 128>}, {pipeline_mode = #tpu.pipeline_mode<synchronous>, transform_indices = @transform_7, window_bounds = array<i64: 128, 256>}, {pipeline_mode = #tpu.pipeline_mode<synchronous>, transform_indices = @transform_8, window_bounds = array<i64: 1, 256>}, {pipeline_mode = #tpu.pipeline_mode<synchronous>, transform_indices = @transform_9, window_bounds = array<i64: 256, 512>}, {pipeline_mode = #tpu.pipeline_mode<synchronous>, transform_indices = @transform_10, window_bounds = array<i64: 1, 512>}, {pipeline_mode = #tpu.pipeline_mode<synchronous>, transform_indices = @transform_11, window_bounds = array<i64: 512, 128>}, {pipeline_mode = #tpu.pipeline_mode<synchronous>, transform_indices = @transform_12, window_bounds = array<i64: 1, 128>}, {transform_indices = @transform_13, window_bounds = array<i64: 16, 128>}]} {
    %c0 = arith.constant 0 : index
    %c0_0 = arith.constant 0 : index
    %0 = vector.load %arg1[%c0, %c0_0] : memref<16x32xf32, #tpu.memory_space<vmem>>, vector<16x32xf32>
    %1 = arith.truncf %0 : vector<16x32xf32> to vector<16x32xbf16>
    %c0_1 = arith.constant 0 : index
    %c0_2 = arith.constant 0 : index
    %2 = vector.load %arg2[%c0_1, %c0_2] : memref<32x512xbf16, #tpu.memory_space<vmem>>, vector<32x512xbf16>
    %cst = arith.constant dense<0.000000e+00> : vector<16x512xf32>
    %3 = tpu.matmul %1, %2, %cst {dimension_numbers = #tpu.dot_dimension_numbers<[1], [0], [0], [1], [0, 0, 1, 1], [], []>} : vector<16x32xbf16>, vector<32x512xbf16>, vector<16x512xf32> -> vector<16x512xf32>
    %c0_3 = arith.constant 0 : index
    %c0_4 = arith.constant 0 : index
    %4 = vector.load %arg3[%c0_3, %c0_4] : memref<1x512xf32, #tpu.memory_space<vmem>>, vector<1x512xf32>
    %5 = vector.broadcast %4 : vector<1x512xf32> to vector<16x512xf32>
    %6 = arith.addf %3, %5 : vector<16x512xf32>
    %7 = arith.truncf %6 : vector<16x512xf32> to vector<16x512xbf16>
    %cst_5 = arith.constant 5.000000e-01 : bf16
    %8 = vector.broadcast %cst_5 : bf16 to vector<16x512xbf16>
    %9 = arith.mulf %8, %7 : vector<16x512xbf16>
    %10 = math.tanh %9 : vector<16x512xbf16>
    %cst_6 = arith.constant 5.000000e-01 : bf16
    %11 = vector.broadcast %cst_6 : bf16 to vector<16x512xbf16>
    %12 = arith.mulf %11, %10 : vector<16x512xbf16>
    %cst_7 = arith.constant 5.000000e-01 : bf16
    %13 = vector.broadcast %cst_7 : bf16 to vector<16x512xbf16>
    %14 = arith.addf %12, %13 : vector<16x512xbf16>
    %c0_8 = arith.constant 0 : index
    %c0_9 = arith.constant 0 : index
    %15 = vector.load %arg4[%c0_8, %c0_9] : memref<512x256xbf16, #tpu.memory_space<vmem>>, vector<512x256xbf16>
    %cst_10 = arith.constant dense<0.000000e+00> : vector<16x256xf32>
    %16 = tpu.matmul %14, %15, %cst_10 {dimension_numbers = #tpu.dot_dimension_numbers<[1], [0], [0], [1], [0, 0, 1, 1], [], []>} : vector<16x512xbf16>, vector<512x256xbf16>, vector<16x256xf32> -> vector<16x256xf32>
    %c0_11 = arith.constant 0 : index
    %c0_12 = arith.constant 0 : index
    %17 = vector.load %arg5[%c0_11, %c0_12] : memref<1x256xf32, #tpu.memory_space<vmem>>, vector<1x256xf32>
    %18 = vector.broadcast %17 : vector<1x256xf32> to vector<16x256xf32>
    %19 = arith.addf %16, %18 : vector<16x256xf32>
    %20 = arith.truncf %19 : vector<16x256xf32> to vector<16x256xbf16>
    %cst_13 = arith.constant 5.000000e-01 : bf16
    %21 = vector.broadcast %cst_13 : bf16 to vector<16x256xbf16>
    %22 = arith.mulf %21, %20 : vector<16x256xbf16>
    %23 = math.tanh %22 : vector<16x256xbf16>
    %cst_14 = arith.constant 5.000000e-01 : bf16
    %24 = vector.broadcast %cst_14 : bf16 to vector<16x256xbf16>
    %25 = arith.mulf %24, %23 : vector<16x256xbf16>
    %cst_15 = arith.constant 5.000000e-01 : bf16
    %26 = vector.broadcast %cst_15 : bf16 to vector<16x256xbf16>
    %27 = arith.addf %25, %26 : vector<16x256xbf16>
    %c0_16 = arith.constant 0 : index
    %c0_17 = arith.constant 0 : index
    %28 = vector.load %arg6[%c0_16, %c0_17] : memref<256x128xbf16, #tpu.memory_space<vmem>>, vector<256x128xbf16>
    %cst_18 = arith.constant dense<0.000000e+00> : vector<16x128xf32>
    %29 = tpu.matmul %27, %28, %cst_18 {dimension_numbers = #tpu.dot_dimension_numbers<[1], [0], [0], [1], [0, 0, 1, 1], [], []>} : vector<16x256xbf16>, vector<256x128xbf16>, vector<16x128xf32> -> vector<16x128xf32>
    %c0_19 = arith.constant 0 : index
    %c0_20 = arith.constant 0 : index
    %30 = vector.load %arg7[%c0_19, %c0_20] : memref<1x128xf32, #tpu.memory_space<vmem>>, vector<1x128xf32>
    %31 = vector.broadcast %30 : vector<1x128xf32> to vector<16x128xf32>
    %32 = arith.addf %29, %31 : vector<16x128xf32>
    %33 = arith.truncf %32 : vector<16x128xf32> to vector<16x128xbf16>
    %cst_21 = arith.constant 5.000000e-01 : bf16
    %34 = vector.broadcast %cst_21 : bf16 to vector<16x128xbf16>
    %35 = arith.mulf %34, %33 : vector<16x128xbf16>
    %36 = math.tanh %35 : vector<16x128xbf16>
    %cst_22 = arith.constant 5.000000e-01 : bf16
    %37 = vector.broadcast %cst_22 : bf16 to vector<16x128xbf16>
    %38 = arith.mulf %37, %36 : vector<16x128xbf16>
    %cst_23 = arith.constant 5.000000e-01 : bf16
    %39 = vector.broadcast %cst_23 : bf16 to vector<16x128xbf16>
    %40 = arith.addf %38, %39 : vector<16x128xbf16>
    %c0_24 = arith.constant 0 : index
    %c0_25 = arith.constant 0 : index
    %41 = vector.load %arg8[%c0_24, %c0_25] : memref<128x256xbf16, #tpu.memory_space<vmem>>, vector<128x256xbf16>
    %cst_26 = arith.constant dense<0.000000e+00> : vector<16x256xf32>
    %42 = tpu.matmul %40, %41, %cst_26 {dimension_numbers = #tpu.dot_dimension_numbers<[1], [0], [0], [1], [0, 0, 1, 1], [], []>} : vector<16x128xbf16>, vector<128x256xbf16>, vector<16x256xf32> -> vector<16x256xf32>
    %c0_27 = arith.constant 0 : index
    %c0_28 = arith.constant 0 : index
    %43 = vector.load %arg9[%c0_27, %c0_28] : memref<1x256xf32, #tpu.memory_space<vmem>>, vector<1x256xf32>
    %44 = vector.broadcast %43 : vector<1x256xf32> to vector<16x256xf32>
    %45 = arith.addf %42, %44 : vector<16x256xf32>
    %46 = arith.truncf %45 : vector<16x256xf32> to vector<16x256xbf16>
    %cst_29 = arith.constant 5.000000e-01 : bf16
    %47 = vector.broadcast %cst_29 : bf16 to vector<16x256xbf16>
    %48 = arith.mulf %47, %46 : vector<16x256xbf16>
    %49 = math.tanh %48 : vector<16x256xbf16>
    %cst_30 = arith.constant 5.000000e-01 : bf16
    %50 = vector.broadcast %cst_30 : bf16 to vector<16x256xbf16>
    %51 = arith.mulf %50, %49 : vector<16x256xbf16>
    %cst_31 = arith.constant 5.000000e-01 : bf16
    %52 = vector.broadcast %cst_31 : bf16 to vector<16x256xbf16>
    %53 = arith.addf %51, %52 : vector<16x256xbf16>
    %c0_32 = arith.constant 0 : index
    %c0_33 = arith.constant 0 : index
    %54 = vector.load %arg10[%c0_32, %c0_33] : memref<256x512xbf16, #tpu.memory_space<vmem>>, vector<256x512xbf16>
    %cst_34 = arith.constant dense<0.000000e+00> : vector<16x512xf32>
    %55 = tpu.matmul %53, %54, %cst_34 {dimension_numbers = #tpu.dot_dimension_numbers<[1], [0], [0], [1], [0, 0, 1, 1], [], []>} : vector<16x256xbf16>, vector<256x512xbf16>, vector<16x512xf32> -> vector<16x512xf32>
    %c0_35 = arith.constant 0 : index
    %c0_36 = arith.constant 0 : index
    %56 = vector.load %arg11[%c0_35, %c0_36] : memref<1x512xf32, #tpu.memory_space<vmem>>, vector<1x512xf32>
    %57 = vector.broadcast %56 : vector<1x512xf32> to vector<16x512xf32>
    %58 = arith.addf %55, %57 : vector<16x512xf32>
    %59 = arith.truncf %58 : vector<16x512xf32> to vector<16x512xbf16>
    %cst_37 = arith.constant 5.000000e-01 : bf16
    %60 = vector.broadcast %cst_37 : bf16 to vector<16x512xbf16>
    %61 = arith.mulf %60, %59 : vector<16x512xbf16>
    %62 = math.tanh %61 : vector<16x512xbf16>
    %cst_38 = arith.constant 5.000000e-01 : bf16
    %63 = vector.broadcast %cst_38 : bf16 to vector<16x512xbf16>
    %64 = arith.mulf %63, %62 : vector<16x512xbf16>
    %cst_39 = arith.constant 5.000000e-01 : bf16
    %65 = vector.broadcast %cst_39 : bf16 to vector<16x512xbf16>
    %66 = arith.addf %64, %65 : vector<16x512xbf16>
    %c0_40 = arith.constant 0 : index
    %c0_41 = arith.constant 0 : index
    %67 = vector.load %arg12[%c0_40, %c0_41] : memref<512x128xbf16, #tpu.memory_space<vmem>>, vector<512x128xbf16>
    %cst_42 = arith.constant dense<0.000000e+00> : vector<16x128xf32>
    %68 = tpu.matmul %66, %67, %cst_42 {dimension_numbers = #tpu.dot_dimension_numbers<[1], [0], [0], [1], [0, 0, 1, 1], [], []>} : vector<16x512xbf16>, vector<512x128xbf16>, vector<16x128xf32> -> vector<16x128xf32>
    %c0_43 = arith.constant 0 : index
    %c0_44 = arith.constant 0 : index
    %69 = vector.load %arg13[%c0_43, %c0_44] : memref<1x128xf32, #tpu.memory_space<vmem>>, vector<1x128xf32>
    %70 = vector.broadcast %69 : vector<1x128xf32> to vector<16x128xf32>
    %71 = arith.addf %68, %70 : vector<16x128xf32>
    %cst_45 = arith.constant 5.000000e-01 : f32
    %72 = vector.broadcast %cst_45 : f32 to vector<16x128xf32>
    %73 = arith.mulf %72, %71 : vector<16x128xf32>
    %74 = math.tanh %73 : vector<16x128xf32>
    %cst_46 = arith.constant 5.000000e-01 : f32
    %75 = vector.broadcast %cst_46 : f32 to vector<16x128xf32>
    %76 = arith.mulf %75, %74 : vector<16x128xf32>
    %cst_47 = arith.constant 5.000000e-01 : f32
    %77 = vector.broadcast %cst_47 : f32 to vector<16x128xf32>
    %78 = arith.addf %76, %77 : vector<16x128xf32>
    %c0_48 = arith.constant 0 : index
    %c0_49 = arith.constant 0 : index
    %79 = vector.load %arg14[%c0_48, %c0_49] : memref<16x128xf32, #tpu.memory_space<vmem>>, vector<16x128xf32>
    tpu.vector_store %arg14[%c0_48, %c0_49], %78 {strides = array<i32>} : memref<16x128xf32, #tpu.memory_space<vmem>>, vector<16x128xf32>,
    return
  }
  func.func @transform_0(%arg0: i32) -> (i32, i32) {
    %c0_i32 = arith.constant 0 : i32
    %c0_i32_0 = arith.constant 0 : i32
    return %arg0, %c0_i32 : i32, i32
  }
  func.func @transform_1(%arg0: i32) -> (i32, i32) {
    %c0_i32 = arith.constant 0 : i32
    %c0_i32_0 = arith.constant 0 : i32
    %c0_i32_1 = arith.constant 0 : i32
    return %c0_i32, %c0_i32_0 : i32, i32
  }
  func.func @transform_2(%arg0: i32) -> (i32, i32) {
    %c0_i32 = arith.constant 0 : i32
    %c0_i32_0 = arith.constant 0 : i32
    %c0_i32_1 = arith.constant 0 : i32
    return %c0_i32, %c0_i32_0 : i32, i32
  }
  func.func @transform_3(%arg0: i32) -> (i32, i32) {
    %c0_i32 = arith.constant 0 : i32
    %c0_i32_0 = arith.constant 0 : i32
    %c0_i32_1 = arith.constant 0 : i32
    return %c0_i32, %c0_i32_0 : i32, i32
  }
  func.func @transform_4(%arg0: i32) -> (i32, i32) {
    %c0_i32 = arith.constant 0 : i32
    %c0_i32_0 = arith.constant 0 : i32
    %c0_i32_1 = arith.constant 0 : i32
    return %c0_i32, %c0_i32_0 : i32, i32
  }
  func.func @transform_5(%arg0: i32) -> (i32, i32) {
    %c0_i32 = arith.constant 0 : i32
    %c0_i32_0 = arith.constant 0 : i32
    %c0_i32_1 = arith.constant 0 : i32
    return %c0_i32, %c0_i32_0 : i32, i32
  }
  func.func @transform_6(%arg0: i32) -> (i32, i32) {
    %c0_i32 = arith.constant 0 : i32
    %c0_i32_0 = arith.constant 0 : i32
    %c0_i32_1 = arith.constant 0 : i32
    return %c0_i32, %c0_i32_0 : i32, i32
  }
  func.func @transform_7(%arg0: i32) -> (i32, i32) {
    %c0_i32 = arith.constant 0 : i32
    %c0_i32_0 = arith.constant 0 : i32
    %c0_i32_1 = arith.constant 0 : i32
    return %c0_i32, %c0_i32_0 : i32, i32
  }
  func.func @transform_8(%arg0: i32) -> (i32, i32) {
    %c0_i32 = arith.constant 0 : i32
    %c0_i32_0 = arith.constant 0 : i32
    %c0_i32_1 = arith.constant 0 : i32
    return %c0_i32, %c0_i32_0 : i32, i32
  }
  func.func @transform_9(%arg0: i32) -> (i32, i32) {
    %c0_i32 = arith.constant 0 : i32
    %c0_i32_0 = arith.constant 0 : i32
    %c0_i32_1 = arith.constant 0 : i32
    return %c0_i32, %c0_i32_0 : i32, i32
  }
  func.func @transform_10(%arg0: i32) -> (i32, i32) {
    %c0_i32 = arith.constant 0 : i32
    %c0_i32_0 = arith.constant 0 : i32
    %c0_i32_1 = arith.constant 0 : i32
    return %c0_i32, %c0_i32_0 : i32, i32
  }
  func.func @transform_11(%arg0: i32) -> (i32, i32) {
    %c0_i32 = arith.constant 0 : i32
    %c0_i32_0 = arith.constant 0 : i32
    %c0_i32_1 = arith.constant 0 : i32
    return %c0_i32, %c0_i32_0 : i32, i32
  }
  func.func @transform_12(%arg0: i32) -> (i32, i32) {
    %c0_i32 = arith.constant 0 : i32
    %c0_i32_0 = arith.constant 0 : i32
    %c0_i32_1 = arith.constant 0 : i32
    return %c0_i32, %c0_i32_0 : i32, i32
  }
  func.func @transform_13(%arg0: i32) -> (i32, i32) {
    %c0_i32 = arith.constant 0 : i32
    %c0_i32_0 = arith.constant 0 : i32
    return %arg0, %c0_i32 : i32, i32
  }
}

</mosaic_0001>

<llo_original>
// kernel: tpu_custom_call.1
$region0: #{tpu_custom_call.1}
  #allocation0 [shape = 'u32[]', space=smem, size = 0x4, offset = 0x4, fixed_abs, tag = 'smem constant byte address 0x4 - core index']
  #allocation1 [shape = 'u32[72,128]{1,0:T(1,128)}', space=vmem, size = 0x9000, scoped, tag = 'internal scratch']
  %s0 = inlined_call_operand.hbm [shape: f32[32,32], index: 0, kind: input, shape index: {}]
  %s1 = inlined_call_operand.hbm [shape: bf16[32,512], index: 1, kind: input, shape index: {}]
  %s2 = inlined_call_operand.hbm [shape: f32[1,512], index: 2, kind: input, shape index: {}]
  %s3 = inlined_call_operand.hbm [shape: bf16[512,256], index: 3, kind: input, shape index: {}]
  %s4 = inlined_call_operand.vmem [shape: f32[1,256], index: 4, kind: input, shape index: {}]
  %s5 = inlined_call_operand.hbm [shape: bf16[256,128], index: 5, kind: input, shape index: {}]
  %s6 = inlined_call_operand.vmem [shape: f32[1,128], index: 6, kind: input, shape index: {}]
  %s7 = inlined_call_operand.hbm [shape: bf16[128,256], index: 7, kind: input, shape index: {}]
  %s8 = inlined_call_operand.hbm [shape: f32[1,256], index: 8, kind: input, shape index: {}]
  %s9 = inlined_call_operand.hbm [shape: bf16[256,512], index: 9, kind: input, shape index: {}]
  %s10 = inlined_call_operand.vmem [shape: f32[1,512], index: 10, kind: input, shape index: {}]
  %s11 = inlined_call_operand.hbm [shape: bf16[512,128], index: 11, kind: input, shape index: {}]
  %s12 = inlined_call_operand.vmem [shape: f32[1,128], index: 12, kind: input, shape index: {}]
  %s13 = inlined_call_operand.hbm [shape: f32[32,128], index: 13, kind: output, shape index: {}]
  %s14 = sld [smem:[#allocation0]]
  $region121: #{tpu_custom_call.1} parent=0
    _
  %s16 = ssub.s32 1, %s14
  %s17 = scalar_select 0, %s16, %s14
  $region1: #{tpu_custom_call.1} parent=0
    #allocation2 [shape = 'u8[16384]{0}', space=vmem, size = 0x4000, scoped, tag = 'input window, operand 0']
    #allocation3 [shape = 's32[2]{0}', space=sflag, size = 0x8, scoped, tag = 'scoped memory for tpu_custom_call.1']
    #allocation4 [shape = 's32[2]{0}', space=sflag, size = 0x8, scoped, tag = 'scoped memory for tpu_custom_call.1']
    #allocation5 [shape = 'u8[32768]{0}', space=vmem, size = 0x8000, scoped, tag = 'input window, operand 1, single buffered']
    #allocation6 [shape = 's32[1]{0}', space=sflag, size = 0x4, scoped, tag = 'scoped memory for tpu_custom_call.1']
    #allocation7 [shape = 'u8[2048]{0}', space=vmem, size = 0x800, scoped, tag = 'input window, operand 2, single buffered']
    #allocation8 [shape = 'u8[262144]{0}', space=vmem, size = 0x40000, scoped, tag = 'input window, operand 3, single buffered']
    #allocation9 [shape = 's32[1]{0}', space=sflag, size = 0x4, scoped, tag = 'scoped memory for tpu_custom_call.1']
    #allocation10 [shape = 'u8[65536]{0}', space=vmem, size = 0x10000, scoped, tag = 'input window, operand 5, single buffered']
    #allocation11 [shape = 'u8[65536]{0}', space=vmem, size = 0x10000, scoped, tag = 'input window, operand 7, single buffered']
    #allocation12 [shape = 's32[1]{0}', space=sflag, size = 0x4, scoped, tag = 'scoped memory for tpu_custom_call.1']
    #allocation13 [shape = 'u8[1024]{0}', space=vmem, size = 0x400, scoped, tag = 'input window, operand 8, single buffered']
    #allocation14 [shape = 'u8[262144]{0}', space=vmem, size = 0x40000, scoped, tag = 'input window, operand 9, single buffered']
    #allocation15 [shape = 's32[1]{0}', space=sflag, size = 0x4, scoped, tag = 'scoped memory for tpu_custom_call.1']
    #allocation16 [shape = 'u8[131072]{0}', space=vmem, size = 0x20000, scoped, tag = 'input window, operand 11, single buffered']
    #allocation17 [shape = 'u8[16384]{0}', space=vmem, size = 0x4000, scoped, tag = 'output window, operand 0']
    %18 = vsyncpa [#allocation3], 0
    %s19 = scalar_lea.sflag [#allocation3], 1
    %20 = vsyncpa %s19, 0
    %21 = vsyncpa [#allocation6], 0
    %22 = vsyncpa [#allocation9], 0
    %23 = vsyncpa [#allocation12], 0
    %24 = vsyncpa [#allocation15], 0
    %25 = vsyncpa [#allocation4], 0
    %s26 = scalar_lea.sflag [#allocation4], 1
    %27 = vsyncpa %s26, 0
    loop: start=0, step=1, limit=4
    $region2: #{tpu_custom_call.1} parent=1 // loop_pre_header
      _
    $region3: #{tpu_custom_call.1} parent=1 // loop_header
      %s29 = sphi 0, %s33
      %p30 = scmp.ge.s32.totalorder %s29, 4
      %s39 = sphi 0, %s41
      %s42 = sphi 0, %s39
      %s43 = sphi 0, %s42
      %s59 = sphi 0, %s43
      %s63 = sphi 0, %s63
      %s65 = sphi 0, %s63
      %s66 = sphi 0, %s65
      %s80 = sphi 0, %s66
      %s84 = sphi 0, %s84
      %s86 = sphi 0, %s84
      %s87 = sphi 0, %s86
      %s101 = sphi 0, %s87
      %s105 = sphi 0, %s105
      %s107 = sphi 0, %s105
      %s108 = sphi 0, %s107
      %s122 = sphi 0, %s108
      %s126 = sphi 0, %s126
      %s128 = sphi 0, %s126
      %s129 = sphi 0, %s128
      %s143 = sphi 0, %s129
      %s147 = sphi 0, %s147
      %s149 = sphi 0, %s147
      %s150 = sphi 0, %s149
      %s164 = sphi 0, %s150
      %s168 = sphi 0, %s168
      %s170 = sphi 0, %s168
      %s171 = sphi 0, %s170
      %s185 = sphi 0, %s171
      %s189 = sphi 0, %s189
      %s191 = sphi 0, %s189
      %s192 = sphi 0, %s191
      %s206 = sphi 0, %s192
      %s210 = sphi 0, %s210
      %s212 = sphi 0, %s210
      %s213 = sphi 0, %s212
      %s227 = sphi 0, %s213
      %s231 = sphi 0, %s231
      %s233 = sphi 0, %s231
      %s234 = sphi 0, %s233
      %s248 = sphi 0, %s234
      %s252 = sphi 0, %s252
      %s254 = sphi 0, %s252
      %s255 = sphi 0, %s254
      %s269 = sphi 0, %s255
      %s273 = sphi 0, %s273
      %s275 = sphi 0, %s273
      %s276 = sphi 0, %s275
      %s290 = sphi 0, %s276
      %s294 = sphi 0, %s294
      %s296 = sphi 0, %s294
      %s297 = sphi 0, %s296
      %s311 = sphi 0, %s297
      %s317 = sphi 0, %s319
      %s320 = sphi 0, %s317
      %s321 = sphi 0, %s320
      %s337 = sphi 0, %s321
    $region4: #{tpu_custom_call.1} parent=1 // loop_header_branch
      %32 = sbr.rel (%p30) target = $region8
    $region5: #{tpu_custom_call.1} parent=1 // loop_body
      %s34 = ssub.s32 %s29, 1
      %s35 = ssub.s32 %s29, 2
      %s36 = sadd.s32 %s29, 1
      %s37 = ssub.s32 %s29, %s36
      %p38 = scmp.eq.s32.totalorder %s37, 0
      %s40 = sadd.s32 %s39, 1
      %s41 = scalar_select %p38, %s39, %s40
      %p44 = pneg %p38
      %p45 = scmp.eq.s32.totalorder %s29, 1
      %p46 = por %p44, %p45
      %p47 = scmp.ne.s32.totalorder %s39, %s42
      %p48 = scmp.eq.s32.totalorder %s29, 0
      %p49 = por %p47, %p48
      %p50 = scmp.ne.s32.totalorder %s39, %s42
      %p51 = scmp.eq.s32.totalorder %s34, 1
      %p52 = por %p50, %p51
      %p53 = scmp.ne.s32.totalorder %s42, %s43
      %p54 = scmp.eq.s32.totalorder %s34, 0
      %p55 = por %p53, %p54
      %p56 = scmp.ne.s32.totalorder %s42, %s43
      %p57 = scmp.eq.s32.totalorder %s35, 1
      %p58 = por %p56, %p57
      %p60 = scmp.ne.s32.totalorder %s43, %s59
      %p61 = scmp.eq.s32.totalorder %s35, 0
      %p62 = por %p60, %p61
      %s64 = sadd.s32 %s63, 1
      %p67 = scmp.eq.s32.totalorder %s29, 1
      %p68 = scmp.ne.s32.totalorder %s63, %s65
      %p69 = scmp.eq.s32.totalorder %s29, 0
      %p70 = por %p68, %p69
      %p71 = scmp.ne.s32.totalorder %s63, %s65
      %p72 = scmp.eq.s32.totalorder %s34, 1
      %p73 = por %p71, %p72
      %p74 = scmp.ne.s32.totalorder %s65, %s66
      %p75 = scmp.eq.s32.totalorder %s34, 0
      %p76 = por %p74, %p75
      %p77 = scmp.ne.s32.totalorder %s65, %s66
      %p78 = scmp.eq.s32.totalorder %s35, 1
      %p79 = por %p77, %p78
      %p81 = scmp.ne.s32.totalorder %s66, %s80
      %p82 = scmp.eq.s32.totalorder %s35, 0
      %p83 = por %p81, %p82
      %s85 = sadd.s32 %s84, 1
      %p88 = scmp.eq.s32.totalorder %s29, 1
      %p89 = scmp.ne.s32.totalorder %s84, %s86
      %p90 = scmp.eq.s32.totalorder %s29, 0
      %p91 = por %p89, %p90
      %p92 = scmp.ne.s32.totalorder %s84, %s86
      %p93 = scmp.eq.s32.totalorder %s34, 1
      %p94 = por %p92, %p93
      %p95 = scmp.ne.s32.totalorder %s86, %s87
      %p96 = scmp.eq.s32.totalorder %s34, 0
      %p97 = por %p95, %p96
      %p98 = scmp.ne.s32.totalorder %s86, %s87
      %p99 = scmp.eq.s32.totalorder %s35, 1
      %p100 = por %p98, %p99
      %p102 = scmp.ne.s32.totalorder %s87, %s101
      %p103 = scmp.eq.s32.totalorder %s35, 0
      %p104 = por %p102, %p103
      %s106 = sadd.s32 %s105, 1
      %p109 = scmp.eq.s32.totalorder %s29, 1
      %p110 = scmp.ne.s32.totalorder %s105, %s107
      %p111 = scmp.eq.s32.totalorder %s29, 0
      %p112 = por %p110, %p111
      %p113 = scmp.ne.s32.totalorder %s105, %s107
      %p114 = scmp.eq.s32.totalorder %s34, 1
      %p115 = por %p113, %p114
      %p116 = scmp.ne.s32.totalorder %s107, %s108
      %p117 = scmp.eq.s32.totalorder %s34, 0
      %p118 = por %p116, %p117
      %p119 = scmp.ne.s32.totalorder %s107, %s108
      %p120 = scmp.eq.s32.totalorder %s35, 1
      %p121 = por %p119, %p120
      %p123 = scmp.ne.s32.totalorder %s108, %s122
      %p124 = scmp.eq.s32.totalorder %s35, 0
      %p125 = por %p123, %p124
      %s127 = sadd.s32 %s126, 1
      %p130 = scmp.eq.s32.totalorder %s29, 1
      %p131 = scmp.ne.s32.totalorder %s126, %s128
      %p132 = scmp.eq.s32.totalorder %s29, 0
      %p133 = por %p131, %p132
      %p134 = scmp.ne.s32.totalorder %s126, %s128
      %p135 = scmp.eq.s32.totalorder %s34, 1
      %p136 = por %p134, %p135
      %p137 = scmp.ne.s32.totalorder %s128, %s129
      %p138 = scmp.eq.s32.totalorder %s34, 0
      %p139 = por %p137, %p138
      %p140 = scmp.ne.s32.totalorder %s128, %s129
      %p141 = scmp.eq.s32.totalorder %s35, 1
      %p142 = por %p140, %p141
      %p144 = scmp.ne.s32.totalorder %s129, %s143
      %p145 = scmp.eq.s32.totalorder %s35, 0
      %p146 = por %p144, %p145
      %s148 = sadd.s32 %s147, 1
      %p151 = scmp.eq.s32.totalorder %s29, 1
      %p152 = scmp.ne.s32.totalorder %s147, %s149
      %p153 = scmp.eq.s32.totalorder %s29, 0
      %p154 = por %p152, %p153
      %p155 = scmp.ne.s32.totalorder %s147, %s149
      %p156 = scmp.eq.s32.totalorder %s34, 1
      %p157 = por %p155, %p156
      %p158 = scmp.ne.s32.totalorder %s149, %s150
      %p159 = scmp.eq.s32.totalorder %s34, 0
      %p160 = por %p158, %p159
      %p161 = scmp.ne.s32.totalorder %s149, %s150
      %p162 = scmp.eq.s32.totalorder %s35, 1
      %p163 = por %p161, %p162
      %p165 = scmp.ne.s32.totalorder %s150, %s164
      %p166 = scmp.eq.s32.totalorder %s35, 0
      %p167 = por %p165, %p166
      %s169 = sadd.s32 %s168, 1
      %p172 = scmp.eq.s32.totalorder %s29, 1
      %p173 = scmp.ne.s32.totalorder %s168, %s170
      %p174 = scmp.eq.s32.totalorder %s29, 0
      %p175 = por %p173, %p174
      %p176 = scmp.ne.s32.totalorder %s168, %s170
      %p177 = scmp.eq.s32.totalorder %s34, 1
      %p178 = por %p176, %p177
      %p179 = scmp.ne.s32.totalorder %s170, %s171
      %p180 = scmp.eq.s32.totalorder %s34, 0
      %p181 = por %p179, %p180
      %p182 = scmp.ne.s32.totalorder %s170, %s171
      %p183 = scmp.eq.s32.totalorder %s35, 1
      %p184 = por %p182, %p183
      %p186 = scmp.ne.s32.totalorder %s171, %s185
      %p187 = scmp.eq.s32.totalorder %s35, 0
      %p188 = por %p186, %p187
      %s190 = sadd.s32 %s189, 1
      %p193 = scmp.eq.s32.totalorder %s29, 1
      %p194 = scmp.ne.s32.totalorder %s189, %s191
      %p195 = scmp.eq.s32.totalorder %s29, 0
      %p196 = por %p194, %p195
      %p197 = scmp.ne.s32.totalorder %s189, %s191
      %p198 = scmp.eq.s32.totalorder %s34, 1
      %p199 = por %p197, %p198
      %p200 = scmp.ne.s32.totalorder %s191, %s192
      %p201 = scmp.eq.s32.totalorder %s34, 0
      %p202 = por %p200, %p201
      %p203 = scmp.ne.s32.totalorder %s191, %s192
      %p204 = scmp.eq.s32.totalorder %s35, 1
      %p205 = por %p203, %p204
      %p207 = scmp.ne.s32.totalorder %s192, %s206
      %p208 = scmp.eq.s32.totalorder %s35, 0
      %p209 = por %p207, %p208
      %s211 = sadd.s32 %s210, 1
      %p214 = scmp.eq.s32.totalorder %s29, 1
      %p215 = scmp.ne.s32.totalorder %s210, %s212
      %p216 = scmp.eq.s32.totalorder %s29, 0
      %p217 = por %p215, %p216
      %p218 = scmp.ne.s32.totalorder %s210, %s212
      %p219 = scmp.eq.s32.totalorder %s34, 1
      %p220 = por %p218, %p219
      %p221 = scmp.ne.s32.totalorder %s212, %s213
      %p222 = scmp.eq.s32.totalorder %s34, 0
      %p223 = por %p221, %p222
      %p224 = scmp.ne.s32.totalorder %s212, %s213
      %p225 = scmp.eq.s32.totalorder %s35, 1
      %p226 = por %p224, %p225
      %p228 = scmp.ne.s32.totalorder %s213, %s227
      %p229 = scmp.eq.s32.totalorder %s35, 0
      %p230 = por %p228, %p229
      %s232 = sadd.s32 %s231, 1
      %p235 = scmp.eq.s32.totalorder %s29, 1
      %p236 = scmp.ne.s32.totalorder %s231, %s233
      %p237 = scmp.eq.s32.totalorder %s29, 0
      %p238 = por %p236, %p237
      %p239 = scmp.ne.s32.totalorder %s231, %s233
      %p240 = scmp.eq.s32.totalorder %s34, 1
      %p241 = por %p239, %p240
      %p242 = scmp.ne.s32.totalorder %s233, %s234
      %p243 = scmp.eq.s32.totalorder %s34, 0
      %p244 = por %p242, %p243
      %p245 = scmp.ne.s32.totalorder %s233, %s234
      %p246 = scmp.eq.s32.totalorder %s35, 1
      %p247 = por %p245, %p246
      %p249 = scmp.ne.s32.totalorder %s234, %s248
      %p250 = scmp.eq.s32.totalorder %s35, 0
      %p251 = por %p249, %p250
      %s253 = sadd.s32 %s252, 1
      %p256 = scmp.eq.s32.totalorder %s29, 1
      %p257 = scmp.ne.s32.totalorder %s252, %s254
      %p258 = scmp.eq.s32.totalorder %s29, 0
      %p259 = por %p257, %p258
      %p260 = scmp.ne.s32.totalorder %s252, %s254
      %p261 = scmp.eq.s32.totalorder %s34, 1
      %p262 = por %p260, %p261
      %p263 = scmp.ne.s32.totalorder %s254, %s255
      %p264 = scmp.eq.s32.totalorder %s34, 0
      %p265 = por %p263, %p264
      %p266 = scmp.ne.s32.totalorder %s254, %s255
      %p267 = scmp.eq.s32.totalorder %s35, 1
      %p268 = por %p266, %p267
      %p270 = scmp.ne.s32.totalorder %s255, %s269
      %p271 = scmp.eq.s32.totalorder %s35, 0
      %p272 = por %p270, %p271
      %s274 = sadd.s32 %s273, 1
      %p277 = scmp.eq.s32.totalorder %s29, 1
      %p278 = scmp.ne.s32.totalorder %s273, %s275
      %p279 = scmp.eq.s32.totalorder %s29, 0
      %p280 = por %p278, %p279
      %p281 = scmp.ne.s32.totalorder %s273, %s275
      %p282 = scmp.eq.s32.totalorder %s34, 1
      %p283 = por %p281, %p282
      %p284 = scmp.ne.s32.totalorder %s275, %s276
      %p285 = scmp.eq.s32.totalorder %s34, 0
      %p286 = por %p284, %p285
      %p287 = scmp.ne.s32.totalorder %s275, %s276
      %p288 = scmp.eq.s32.totalorder %s35, 1
      %p289 = por %p287, %p288
      %p291 = scmp.ne.s32.totalorder %s276, %s290
      %p292 = scmp.eq.s32.totalorder %s35, 0
      %p293 = por %p291, %p292
      %s295 = sadd.s32 %s294, 1
      %p298 = scmp.eq.s32.totalorder %s29, 1
      %p299 = scmp.ne.s32.totalorder %s294, %s296
      %p300 = scmp.eq.s32.totalorder %s29, 0
      %p301 = por %p299, %p300
      %p302 = scmp.ne.s32.totalorder %s294, %s296
      %p303 = scmp.eq.s32.totalorder %s34, 1
      %p304 = por %p302, %p303
      %p305 = scmp.ne.s32.totalorder %s296, %s297
      %p306 = scmp.eq.s32.totalorder %s34, 0
      %p307 = por %p305, %p306
      %p308 = scmp.ne.s32.totalorder %s296, %s297
      %p309 = scmp.eq.s32.totalorder %s35, 1
      %p310 = por %p308, %p309
      %p312 = scmp.ne.s32.totalorder %s297, %s311
      %p313 = scmp.eq.s32.totalorder %s35, 0
      %p314 = por %p312, %p313
      %s315 = ssub.s32 %s29, %s36
      %p316 = scmp.eq.s32.totalorder %s315, 0
      %s318 = sadd.s32 %s317, 1
      %s319 = scalar_select %p316, %s317, %s318
      %p322 = pneg %p316
      %p323 = scmp.eq.s32.totalorder %s29, 1
      %p324 = por %p322, %p323
      %p325 = scmp.ne.s32.totalorder %s317, %s320
      %p326 = scmp.eq.s32.totalorder %s29, 0
      %p327 = por %p325, %p326
      %p328 = scmp.ne.s32.totalorder %s317, %s320
      %p329 = scmp.eq.s32.totalorder %s34, 1
      %p330 = por %p328, %p329
      %p331 = scmp.ne.s32.totalorder %s320, %s321
      %p332 = scmp.eq.s32.totalorder %s34, 0
      %p333 = por %p331, %p332
      %p334 = scmp.ne.s32.totalorder %s320, %s321
      %p335 = scmp.eq.s32.totalorder %s35, 1
      %p336 = por %p334, %p335
      %p338 = scmp.ne.s32.totalorder %s321, %s337
      %p339 = scmp.eq.s32.totalorder %s35, 0
      %p340 = por %p338, %p339
      %p341 = scmp.le.s32.totalorder 1, %s29
      %p342 = scmp.lt.s32.totalorder %s29, 3
      %p343 = pnand %p341, %p342
      %p344 = pneg %p343
      // Predicated region
      $region9: #{tpu_custom_call.1} parent=5 // pred_check
        _
      $region10: #{tpu_custom_call.1} parent=5 // pred_check_branch
        %346 = sbr.rel (%p343) target = $region12
      $region11: #{tpu_custom_call.1} parent=5 // pred_region
        %s347 = ssub.s32 %s29, 1
        // Predicated region
        $region13: #{tpu_custom_call.1} parent=11 // pred_check
          %p348 = pneg %p76
        $region14: #{tpu_custom_call.1} parent=11 // pred_check_branch
          %350 = sbr.rel (%p348) target = $region16
        $region15: #{tpu_custom_call.1} parent=11 // pred_region
          %352 = vsyncadd [#allocation6], 0
          %s353 = sshll.u32 %s1, 4
          %s354 = int_to_ptr.hbm [resolvable:$true] %s353
          %s355 = sshll.u32 [#allocation5], 4
          %s356 = int_to_ptr.vmem [resolvable:$true] %s355
          %361 = dma.hbm_to_vmem [thread:$0]  %s354, 1024, %s356, [#allocation6], 256, 256, 16
        $region16: #{tpu_custom_call.1} parent=11 // pred_fallthru
          _
        // Predicated region
        $region17: #{tpu_custom_call.1} parent=11 // pred_check
          %p362 = pneg %p97
        $region18: #{tpu_custom_call.1} parent=11 // pred_check_branch
          %364 = sbr.rel (%p362) target = $region20
        $region19: #{tpu_custom_call.1} parent=11 // pred_region
          %366 = vsyncadd [#allocation6], 0
          %s368 = sshll.u32 %s2, 4
          %s369 = int_to_ptr.hbm [resolvable:$true] %s368
          %s370 = sshll.u32 [#allocation7], 4
          %s371 = int_to_ptr.vmem [resolvable:$true] %s370
          %373 = dma.hbm_to_vmem [thread:$0]  %s369, 64, %s371, [#allocation6]
        $region20: #{tpu_custom_call.1} parent=11 // pred_fallthru
          _
        // Predicated region
        $region21: #{tpu_custom_call.1} parent=11 // pred_check
          %p374 = pneg %p118
        $region22: #{tpu_custom_call.1} parent=11 // pred_check_branch
          %376 = sbr.rel (%p374) target = $region24
        $region23: #{tpu_custom_call.1} parent=11 // pred_region
          %378 = vsyncadd [#allocation9], 0
          %s379 = sshll.u32 %s3, 4
          %s380 = int_to_ptr.hbm [resolvable:$true] %s379
          %s381 = sshll.u32 [#allocation8], 4
          %s382 = int_to_ptr.vmem [resolvable:$true] %s381
          %387 = dma.hbm_to_vmem [thread:$0]  %s380, 8192, %s382, [#allocation9], 128, 128, 8
        $region24: #{tpu_custom_call.1} parent=11 // pred_fallthru
          _
        // Predicated region
        $region25: #{tpu_custom_call.1} parent=11 // pred_check
          %p388 = pneg %p139
        $region26: #{tpu_custom_call.1} parent=11 // pred_check_branch
          %390 = sbr.rel (%p388) target = $region28
        $region27: #{tpu_custom_call.1} parent=11 // pred_region
          _
        $region28: #{tpu_custom_call.1} parent=11 // pred_fallthru
          _
        // Predicated region
        $region29: #{tpu_custom_call.1} parent=11 // pred_check
          %p391 = pneg %p160
        $region30: #{tpu_custom_call.1} parent=11 // pred_check_branch
          %393 = sbr.rel (%p391) target = $region32
        $region31: #{tpu_custom_call.1} parent=11 // pred_region
          %395 = vsyncadd [#allocation9], 0
          %s396 = sshll.u32 %s5, 4
          %s397 = int_to_ptr.hbm [resolvable:$true] %s396
          %s398 = sshll.u32 [#allocation10], 4
          %s399 = int_to_ptr.vmem [resolvable:$true] %s398
          %404 = dma.hbm_to_vmem [thread:$0]  %s397, 2048, %s399, [#allocation9], 64, 64, 4
        $region32: #{tpu_custom_call.1} parent=11 // pred_fallthru
          _
        // Predicated region
        $region33: #{tpu_custom_call.1} parent=11 // pred_check
          %p405 = pneg %p181
        $region34: #{tpu_custom_call.1} parent=11 // pred_check_branch
          %407 = sbr.rel (%p405) target = $region36
        $region35: #{tpu_custom_call.1} parent=11 // pred_region
          _
        $region36: #{tpu_custom_call.1} parent=11 // pred_fallthru
          _
        // Predicated region
        $region37: #{tpu_custom_call.1} parent=11 // pred_check
          %p408 = pneg %p202
        $region38: #{tpu_custom_call.1} parent=11 // pred_check_branch
          %410 = sbr.rel (%p408) target = $region40
        $region39: #{tpu_custom_call.1} parent=11 // pred_region
          %412 = vsyncadd [#allocation12], 0
          %s413 = sshll.u32 %s7, 4
          %s414 = int_to_ptr.hbm [resolvable:$true] %s413
          %s415 = sshll.u32 [#allocation11], 4
          %s416 = int_to_ptr.vmem [resolvable:$true] %s415
          %421 = dma.hbm_to_vmem [thread:$0]  %s414, 2048, %s416, [#allocation12], 128, 128, 8
        $region40: #{tpu_custom_call.1} parent=11 // pred_fallthru
          _
        // Predicated region
        $region41: #{tpu_custom_call.1} parent=11 // pred_check
          %p422 = pneg %p223
        $region42: #{tpu_custom_call.1} parent=11 // pred_check_branch
          %424 = sbr.rel (%p422) target = $region44
        $region43: #{tpu_custom_call.1} parent=11 // pred_region
          %426 = vsyncadd [#allocation12], 0
          %s428 = sshll.u32 %s8, 4
          %s429 = int_to_ptr.hbm [resolvable:$true] %s428
          %s430 = sshll.u32 [#allocation13], 4
          %s431 = int_to_ptr.vmem [resolvable:$true] %s430
          %433 = dma.hbm_to_vmem [thread:$0]  %s429, 32, %s431, [#allocation12]
        $region44: #{tpu_custom_call.1} parent=11 // pred_fallthru
          _
        // Predicated region
        $region45: #{tpu_custom_call.1} parent=11 // pred_check
          %p434 = pneg %p244
        $region46: #{tpu_custom_call.1} parent=11 // pred_check_branch
          %436 = sbr.rel (%p434) target = $region48
        $region47: #{tpu_custom_call.1} parent=11 // pred_region
          %438 = vsyncadd [#allocation15], 0
          %s439 = sshll.u32 %s9, 4
          %s440 = int_to_ptr.hbm [resolvable:$true] %s439
          %s441 = sshll.u32 [#allocation14], 4
          %s442 = int_to_ptr.vmem [resolvable:$true] %s441
          %447 = dma.hbm_to_vmem [thread:$0]  %s440, 8192, %s442, [#allocation15], 256, 256, 16
        $region48: #{tpu_custom_call.1} parent=11 // pred_fallthru
          _
        // Predicated region
        $region49: #{tpu_custom_call.1} parent=11 // pred_check
          %p448 = pneg %p265
        $region50: #{tpu_custom_call.1} parent=11 // pred_check_branch
          %450 = sbr.rel (%p448) target = $region52
        $region51: #{tpu_custom_call.1} parent=11 // pred_region
          _
        $region52: #{tpu_custom_call.1} parent=11 // pred_fallthru
          _
        // Predicated region
        $region53: #{tpu_custom_call.1} parent=11 // pred_check
          %p451 = pneg %p286
        $region54: #{tpu_custom_call.1} parent=11 // pred_check_branch
          %453 = sbr.rel (%p451) target = $region56
        $region55: #{tpu_custom_call.1} parent=11 // pred_region
          %455 = vsyncadd [#allocation15], 0
          %s456 = sshll.u32 %s11, 4
          %s457 = int_to_ptr.hbm [resolvable:$true] %s456
          %s458 = sshll.u32 [#allocation16], 4
          %s459 = int_to_ptr.vmem [resolvable:$true] %s458
          %464 = dma.hbm_to_vmem [thread:$0]  %s457, 4096, %s459, [#allocation15], 64, 64, 4
        $region56: #{tpu_custom_call.1} parent=11 // pred_fallthru
          _
        // Predicated region
        $region57: #{tpu_custom_call.1} parent=11 // pred_check
          %p465 = pneg %p307
        $region58: #{tpu_custom_call.1} parent=11 // pred_check_branch
          %467 = sbr.rel (%p465) target = $region60
        $region59: #{tpu_custom_call.1} parent=11 // pred_region
          _
        $region60: #{tpu_custom_call.1} parent=11 // pred_fallthru
          _
      $region12: #{tpu_custom_call.1} parent=5 // pred_fallthru
        _
      %p468 = scmp.lt.s32.totalorder %s29, 2
      // Predicated region
      $region61: #{tpu_custom_call.1} parent=5 // pred_check
        %p469 = pneg %p468
      $region62: #{tpu_custom_call.1} parent=5 // pred_check_branch
        %471 = sbr.rel (%p469) target = $region64
      $region63: #{tpu_custom_call.1} parent=5 // pred_region
        // Predicated region
        $region65: #{tpu_custom_call.1} parent=63 // pred_check
          %p472 = pneg %p49
        $region66: #{tpu_custom_call.1} parent=63 // pred_check_branch
          %474 = sbr.rel (%p472) target = $region68
        $region67: #{tpu_custom_call.1} parent=63 // pred_region
          %s475 = sand.u32 %s39, 1
          %s476 = scalar_lea.sflag [#allocation3], %s475
          %s477 = sand.u32 %s39, 1
          %s478 = smul.addr %s477, 16
          %s479 = scalar_lea.vmem [#allocation2], %s478
          %s480 = smul.u32 2, %s29
          %482 = vsyncadd %s476, 0
          %s483 = smul.addr %s480, 8
          %s484 = scalar_lea.hbm %s0, %s483
          %s485 = sshll.u32 %s484, 4
          %s486 = int_to_ptr.hbm [resolvable:$true] %s485
          %s487 = sshll.u32 %s479, 4
          %s488 = int_to_ptr.vmem [resolvable:$true] %s487
          %493 = dma.hbm_to_vmem [thread:$0]  %s486, 256, %s488, %s476, 128, 128, 8
        $region68: #{tpu_custom_call.1} parent=63 // pred_fallthru
          _
      $region64: #{tpu_custom_call.1} parent=5 // pred_fallthru
        _
      %p494 = scmp.le.s32.totalorder 1, %s29
      %p495 = scmp.lt.s32.totalorder %s29, 3
      %p496 = pnand %p494, %p495
      %p497 = pneg %p496
      // Predicated region
      $region69: #{tpu_custom_call.1} parent=5 // pred_check
        _
      $region70: #{tpu_custom_call.1} parent=5 // pred_check_branch
        %499 = sbr.rel (%p496) target = $region72
      $region71: #{tpu_custom_call.1} parent=5 // pred_region
        %s500 = ssub.s32 %s29, 1
        %s501 = sand.u32 %s42, 1
        %s502 = scalar_lea.sflag [#allocation3], %s501
        %s503 = sand.u32 %s42, 1
        %s504 = smul.addr %s503, 16
        %s505 = scalar_lea.vmem [#allocation2], %s504
        // Predicated region
        $region73: #{tpu_custom_call.1} parent=71 // pred_check
          %p506 = pneg %p55
        $region74: #{tpu_custom_call.1} parent=71 // pred_check_branch
          %508 = sbr.rel (%p506) target = $region76
        $region75: #{tpu_custom_call.1} parent=71 // pred_region
          %510 = dma.done %s502, 256
        $region76: #{tpu_custom_call.1} parent=71 // pred_fallthru
          _
        // Predicated region
        $region77: #{tpu_custom_call.1} parent=71 // pred_check
          %p511 = pneg %p76
        $region78: #{tpu_custom_call.1} parent=71 // pred_check_branch
          %513 = sbr.rel (%p511) target = $region80
        $region79: #{tpu_custom_call.1} parent=71 // pred_region
          %515 = dma.done [#allocation6], 1024
        $region80: #{tpu_custom_call.1} parent=71 // pred_fallthru
          _
        // Predicated region
        $region81: #{tpu_custom_call.1} parent=71 // pred_check
          %p516 = pneg %p97
        $region82: #{tpu_custom_call.1} parent=71 // pred_check_branch
          %518 = sbr.rel (%p516) target = $region84
        $region83: #{tpu_custom_call.1} parent=71 // pred_region
          %520 = dma.done [#allocation6], 64
        $region84: #{tpu_custom_call.1} parent=71 // pred_fallthru
          _
        // Predicated region
        $region85: #{tpu_custom_call.1} parent=71 // pred_check
          %p521 = pneg %p118
        $region86: #{tpu_custom_call.1} parent=71 // pred_check_branch
          %523 = sbr.rel (%p521) target = $region88
        $region87: #{tpu_custom_call.1} parent=71 // pred_region
          %525 = dma.done [#allocation9], 8192
        $region88: #{tpu_custom_call.1} parent=71 // pred_fallthru
          _
        // Predicated region
        $region89: #{tpu_custom_call.1} parent=71 // pred_check
          %p526 = pneg %p160
        $region90: #{tpu_custom_call.1} parent=71 // pred_check_branch
          %528 = sbr.rel (%p526) target = $region92
        $region91: #{tpu_custom_call.1} parent=71 // pred_region
          %530 = dma.done [#allocation9], 2048
        $region92: #{tpu_custom_call.1} parent=71 // pred_fallthru
          _
        // Predicated region
        $region93: #{tpu_custom_call.1} parent=71 // pred_check
          %p531 = pneg %p202
        $region94: #{tpu_custom_call.1} parent=71 // pred_check_branch
          %533 = sbr.rel (%p531) target = $region96
        $region95: #{tpu_custom_call.1} parent=71 // pred_region
          %535 = dma.done [#allocation12], 2048
        $region96: #{tpu_custom_call.1} parent=71 // pred_fallthru
          _
        // Predicated region
        $region97: #{tpu_custom_call.1} parent=71 // pred_check
          %p536 = pneg %p223
        $region98: #{tpu_custom_call.1} parent=71 // pred_check_branch
          %538 = sbr.rel (%p536) target = $region100
        $region99: #{tpu_custom_call.1} parent=71 // pred_region
          %540 = dma.done [#allocation12], 32
        $region100: #{tpu_custom_call.1} parent=71 // pred_fallthru
          _
        // Predicated region
        $region101: #{tpu_custom_call.1} parent=71 // pred_check
          %p541 = pneg %p244
        $region102: #{tpu_custom_call.1} parent=71 // pred_check_branch
          %543 = sbr.rel (%p541) target = $region104
        $region103: #{tpu_custom_call.1} parent=71 // pred_region
          %545 = dma.done [#allocation15], 8192
        $region104: #{tpu_custom_call.1} parent=71 // pred_fallthru
          _
        // Predicated region
        $region105: #{tpu_custom_call.1} parent=71 // pred_check
          %p546 = pneg %p286
        $region106: #{tpu_custom_call.1} parent=71 // pred_check_branch
          %548 = sbr.rel (%p546) target = $region108
        $region107: #{tpu_custom_call.1} parent=71 // pred_region
          %550 = dma.done [#allocation15], 4096
        $region108: #{tpu_custom_call.1} parent=71 // pred_fallthru
          _
        %s551 = sand.u32 %s42, 1
        %s552 = scalar_lea.sflag [#allocation3], %s551
        %s553 = sand.u32 %s42, 1
        %s554 = smul.addr %s553, 16
        %s555 = scalar_lea.vmem [#allocation2], %s554
        %p556 = pneg %p55
        %p557 = pneg %p52
        %p558 = pneg %p76
        %p559 = pneg %p73
        %p560 = pneg %p97
        %p561 = pneg %p94
        %p562 = pneg %p118
        %p563 = pneg %p115
        %p564 = pneg %p139
        %p565 = pneg %p136
        %p566 = pneg %p160
        %p567 = pneg %p157
        %p568 = pneg %p181
        %p569 = pneg %p178
        %p570 = pneg %p202
        %p571 = pneg %p199
        %p572 = pneg %p223
        %p573 = pneg %p220
        %p574 = pneg %p244
        %p575 = pneg %p241
        %p576 = pneg %p265
        %p577 = pneg %p262
        %p578 = pneg %p286
        %p579 = pneg %p283
        %p580 = pneg %p307
        %p581 = pneg %p304
        %p582 = pneg %p333
        %p583 = pneg %p330
        %s584 = sand.u32 %s320, 1
        %s585 = scalar_lea.sflag [#allocation4], %s584
        %s586 = sand.u32 %s320, 1
        %s587 = smul.addr %s586, 16
        %s588 = scalar_lea.vmem [#allocation17], %s587
        %s589 = smul.u32 2, %s34
        %s590 = smul.u32 2, %s34
        %v592 = vld [vmem:[%s505] sm:$0xff]
        %v593 = vld [vmem:[%s505 + $0x8] sm:$0xff]
        %v594 = vpack.c.bf16 %v593, %v592
        %v595 = vld [vmem:[#allocation5] sm:$0xff]
        %v596 = vld [vmem:[#allocation5 + $0x8] sm:$0xff]
        %v597 = vld [vmem:[#allocation5 + $0x10] sm:$0xff]
        %v598 = vld [vmem:[#allocation5 + $0x18] sm:$0xff]
        %v599 = vld [vmem:[#allocation5 + $0x20] sm:$0xff]
        %v600 = vld [vmem:[#allocation5 + $0x28] sm:$0xff]
        %v601 = vld [vmem:[#allocation5 + $0x30] sm:$0xff]
        %v602 = vld [vmem:[#allocation5 + $0x38] sm:$0xff]
        %v603 = vld [vmem:[#allocation7] sm:$0xf]
        %v605 = vperm.slane %v603, 0
        %v606 = vperm.slane %v603, 1
        %v607 = vperm.slane %v603, 2
        %v608 = vperm.slane %v603, 3
        %v621 = vunpack.c.l.b16 %v595
        %v622 = vunpack.c.h.b16 %v595
        %v623 = vunpack.c.l.b16 %v596
        %v624 = vunpack.c.h.b16 %v596
        %v625 = vunpack.c.l.b16 %v597
        %v626 = vunpack.c.h.b16 %v597
        %v627 = vunpack.c.l.b16 %v598
        %v628 = vunpack.c.h.b16 %v598
        %v629 = vunpack.c.l.b16 %v599
        %v630 = vunpack.c.h.b16 %v599
        %v631 = vunpack.c.l.b16 %v600
        %v632 = vunpack.c.h.b16 %v600
        %v633 = vunpack.c.l.b16 %v601
        %v634 = vunpack.c.h.b16 %v601
        %v635 = vunpack.c.l.b16 %v602
        %v636 = vunpack.c.h.b16 %v602
        %v637 = vpack.c.b16 %v625, %v621
        %v638 = vpack.c.b16 %v626, %v622
        %v639 = vpack.c.b16 %v627, %v623
        %v640 = vpack.c.b16 %v628, %v624
        %v641 = vpack.c.b16 %v633, %v629
        %v642 = vpack.c.b16 %v634, %v630
        %v643 = vpack.c.b16 %v635, %v631
        %v644 = vpack.c.b16 %v636, %v632
        %vm653 = vcmask 261120
        %v655 = vsel %vm653, %v594, 0
        %657 = vmatpush.bf16.msra.mxu0 0
        %658 = vmatpush.bf16.msra.mxu0 0
        %659 = vmatpush.bf16.msra.mxu0 0
        %660 = vmatpush.bf16.msra.mxu0 0
        %661 = vmatpush.bf16.msra.mxu0 0
        %662 = vmatpush.bf16.msra.mxu0 0
        %663 = vmatpush.bf16.msra.mxu0 %v641
        %664 = vmatpush.bf16.msra.mxu0 %v637
        %665 = vmatmul.bf16.gmra.mxu0 %v655
        %v666 = vpop.f32.mrf.mxu0
        %v667 = vadd.f32 %v605, %v666
        %v668 = vpop.f32.mrf.mxu0
        %v669 = vadd.f32 %v605, %v668
        %670 = vdwg.mxu0
        %671 = vmatpush.bf16.msra.mxu0 0
        %672 = vmatpush.bf16.msra.mxu0 0
        %673 = vmatpush.bf16.msra.mxu0 0
        %674 = vmatpush.bf16.msra.mxu0 0
        %675 = vmatpush.bf16.msra.mxu0 0
        %676 = vmatpush.bf16.msra.mxu0 0
        %677 = vmatpush.bf16.msra.mxu0 %v642
        %678 = vmatpush.bf16.msra.mxu0 %v638
        %679 = vmatmul.bf16.gmra.mxu0 %v655
        %v680 = vpop.f32.mrf.mxu0
        %v681 = vadd.f32 %v606, %v680
        %v682 = vpop.f32.mrf.mxu0
        %v683 = vadd.f32 %v606, %v682
        %684 = vdwg.mxu0
        %685 = vmatpush.bf16.msra.mxu0 0
        %686 = vmatpush.bf16.msra.mxu0 0
        %687 = vmatpush.bf16.msra.mxu0 0
        %688 = vmatpush.bf16.msra.mxu0 0
        %689 = vmatpush.bf16.msra.mxu0 0
        %690 = vmatpush.bf16.msra.mxu0 0
        %691 = vmatpush.bf16.msra.mxu0 %v643
        %692 = vmatpush.bf16.msra.mxu0 %v639
        %693 = vmatmul.bf16.gmra.mxu0 %v655
        %v694 = vpop.f32.mrf.mxu0
        %v695 = vadd.f32 %v607, %v694
        %v696 = vpop.f32.mrf.mxu0
        %v697 = vadd.f32 %v607, %v696
        %698 = vdwg.mxu0
        %699 = vmatpush.bf16.msra.mxu0 0
        %700 = vmatpush.bf16.msra.mxu0 0
        %701 = vmatpush.bf16.msra.mxu0 0
        %702 = vmatpush.bf16.msra.mxu0 0
        %703 = vmatpush.bf16.msra.mxu0 0
        %704 = vmatpush.bf16.msra.mxu0 0
        %705 = vmatpush.bf16.msra.mxu0 %v644
        %706 = vmatpush.bf16.msra.mxu0 %v640
        %707 = vmatmul.bf16.gmra.mxu0 %v655
        %v708 = vpop.f32.mrf.mxu0
        %v709 = vadd.f32 %v608, %v708
        %v710 = vpop.f32.mrf.mxu0
        %v711 = vadd.f32 %v608, %v710
        %712 = vdwg.mxu0
        %v713 = vpack.c.bf16 %v681, %v667
        %v714 = vpack.c.bf16 %v709, %v695
        %v715 = vpack.c.bf16 %v683, %v669
        %v716 = vpack.c.bf16 %v711, %v697
        %v717 = vunpack.c.l.bf16 %v713
        %v718 = vunpack.c.h.bf16 %v713
        %v719 = vunpack.c.l.bf16 %v714
        %v720 = vunpack.c.h.bf16 %v714
        %v721 = vunpack.c.l.bf16 %v715
        %v722 = vunpack.c.h.bf16 %v715
        %v723 = vunpack.c.l.bf16 %v716
        %v724 = vunpack.c.h.bf16 %v716
        %v725 = vmul.f32 %v717, 0.5
        %v726 = vmul.f32 %v718, 0.5
        %v727 = vmul.f32 %v719, 0.5
        %v728 = vmul.f32 %v720, 0.5
        %v729 = vmul.f32 %v721, 0.5
        %v730 = vmul.f32 %v722, 0.5
        %v731 = vmul.f32 %v723, 0.5
        %v732 = vmul.f32 %v724, 0.5
        %v733 = vpack.c.bf16 %v726, %v725
        %v734 = vpack.c.bf16 %v728, %v727
        %v735 = vpack.c.bf16 %v730, %v729
        %v736 = vpack.c.bf16 %v732, %v731
        %v737 = vunpack.c.l.bf16 %v733
        %v738 = vunpack.c.h.bf16 %v733
        %v739 = vunpack.c.l.bf16 %v734
        %v740 = vunpack.c.h.bf16 %v734
        %v741 = vunpack.c.l.bf16 %v735
        %v742 = vunpack.c.h.bf16 %v735
        %v743 = vunpack.c.l.bf16 %v736
        %v744 = vunpack.c.h.bf16 %v736
        %v745 = vtanh.pop %v737
        %v746 = vtanh.pop %v738
        %v747 = vtanh.pop %v739
        %v748 = vtanh.pop %v740
        %v749 = vtanh.pop %v741
        %v750 = vtanh.pop %v742
        %v751 = vtanh.pop %v743
        %v752 = vtanh.pop %v744
        %v753 = vpack.c.bf16 %v746, %v745
        %v754 = vpack.c.bf16 %v748, %v747
        %v755 = vpack.c.bf16 %v750, %v749
        %v756 = vpack.c.bf16 %v752, %v751
        %v757 = vunpack.c.l.bf16 %v753
        %v758 = vunpack.c.h.bf16 %v753
        %v759 = vunpack.c.l.bf16 %v754
        %v760 = vunpack.c.h.bf16 %v754
        %v761 = vunpack.c.l.bf16 %v755
        %v762 = vunpack.c.h.bf16 %v755
        %v763 = vunpack.c.l.bf16 %v756
        %v764 = vunpack.c.h.bf16 %v756
        %v765 = vmul.f32 %v757, 0.5
        %v766 = vmul.f32 %v758, 0.5
        %v767 = vmul.f32 %v759, 0.5
        %v768 = vmul.f32 %v760, 0.5
        %v769 = vmul.f32 %v761, 0.5
        %v770 = vmul.f32 %v762, 0.5
        %v771 = vmul.f32 %v763, 0.5
        %v772 = vmul.f32 %v764, 0.5
        %v773 = vpack.c.bf16 %v766, %v765
        %v774 = vpack.c.bf16 %v768, %v767
        %v775 = vpack.c.bf16 %v770, %v769
        %v776 = vpack.c.bf16 %v772, %v771
        %v777 = vunpack.c.l.bf16 %v773
        %v778 = vunpack.c.h.bf16 %v773
        %v779 = vunpack.c.l.bf16 %v774
        %v780 = vunpack.c.h.bf16 %v774
        %v781 = vunpack.c.l.bf16 %v775
        %v782 = vunpack.c.h.bf16 %v775
        %v783 = vunpack.c.l.bf16 %v776
        %v784 = vunpack.c.h.bf16 %v776
        %v785 = vadd.f32 %v777, 0.5
        %v786 = vadd.f32 %v778, 0.5
        %v787 = vadd.f32 %v779, 0.5
        %v788 = vadd.f32 %v780, 0.5
        %v789 = vadd.f32 %v781, 0.5
        %v790 = vadd.f32 %v782, 0.5
        %v791 = vadd.f32 %v783, 0.5
        %v792 = vadd.f32 %v784, 0.5
        %v793 = vpack.c.bf16 %v789, %v785
        %v794 = vpack.c.bf16 %v790, %v786
        %v795 = vpack.c.bf16 %v791, %v787
        %v796 = vpack.c.bf16 %v792, %v788
        %v797 = vld [vmem:[#allocation8] sm:$0xff]
        %v798 = vld [vmem:[#allocation8 + $0x8] sm:$0xff]
        %v799 = vld [vmem:[#allocation8 + $0x10] sm:$0xff]
        %v800 = vld [vmem:[#allocation8 + $0x18] sm:$0xff]
        %v801 = vld [vmem:[#allocation8 + $0x20] sm:$0xff]
        %v802 = vld [vmem:[#allocation8 + $0x28] sm:$0xff]
        %v803 = vld [vmem:[#allocation8 + $0x30] sm:$0xff]
        %v804 = vld [vmem:[#allocation8 + $0x38] sm:$0xff]
        %v805 = vld [vmem:[#allocation8 + $0x40] sm:$0xff]
        %v806 = vld [vmem:[#allocation8 + $0x48] sm:$0xff]
        %v807 = vld [vmem:[#allocation8 + $0x50] sm:$0xff]
        %v808 = vld [vmem:[#allocation8 + $0x58] sm:$0xff]
        %v809 = vld [vmem:[#allocation8 + $0x60] sm:$0xff]
        %v810 = vld [vmem:[#allocation8 + $0x68] sm:$0xff]
        %v811 = vld [vmem:[#allocation8 + $0x70] sm:$0xff]
        %v812 = vld [vmem:[#allocation8 + $0x78] sm:$0xff]
        %v813 = vld [vmem:[#allocation8 + $0x80] sm:$0xff]
        %v814 = vld [vmem:[#allocation8 + $0x88] sm:$0xff]
        %v815 = vld [vmem:[#allocation8 + $0x90] sm:$0xff]
        %v816 = vld [vmem:[#allocation8 + $0x98] sm:$0xff]
        %v817 = vld [vmem:[#allocation8 + $0xa0] sm:$0xff]
        %v818 = vld [vmem:[#allocation8 + $0xa8] sm:$0xff]
        %v819 = vld [vmem:[#allocation8 + $0xb0] sm:$0xff]
        %v820 = vld [vmem:[#allocation8 + $0xb8] sm:$0xff]
        %v821 = vld [vmem:[#allocation8 + $0xc0] sm:$0xff]
        %v822 = vld [vmem:[#allocation8 + $0xc8] sm:$0xff]
        %v823 = vld [vmem:[#allocation8 + $0xd0] sm:$0xff]
        %v824 = vld [vmem:[#allocation8 + $0xd8] sm:$0xff]
        %v825 = vld [vmem:[#allocation8 + $0xe0] sm:$0xff]
        %v826 = vld [vmem:[#allocation8 + $0xe8] sm:$0xff]
        %v827 = vld [vmem:[#allocation8 + $0xf0] sm:$0xff]
        %v828 = vld [vmem:[#allocation8 + $0xf8] sm:$0xff]
        %v829 = vld [vmem:[#allocation8 + $0x100] sm:$0xff]
        %v830 = vld [vmem:[#allocation8 + $0x108] sm:$0xff]
        %v831 = vld [vmem:[#allocation8 + $0x110] sm:$0xff]
        %v832 = vld [vmem:[#allocation8 + $0x118] sm:$0xff]
        %v833 = vld [vmem:[#allocation8 + $0x120] sm:$0xff]
        %v834 = vld [vmem:[#allocation8 + $0x128] sm:$0xff]
        %v835 = vld [vmem:[#allocation8 + $0x130] sm:$0xff]
        %v836 = vld [vmem:[#allocation8 + $0x138] sm:$0xff]
        %v837 = vld [vmem:[#allocation8 + $0x140] sm:$0xff]
        %v838 = vld [vmem:[#allocation8 + $0x148] sm:$0xff]
        %v839 = vld [vmem:[#allocation8 + $0x150] sm:$0xff]
        %v840 = vld [vmem:[#allocation8 + $0x158] sm:$0xff]
        %v841 = vld [vmem:[#allocation8 + $0x160] sm:$0xff]
        %v842 = vld [vmem:[#allocation8 + $0x168] sm:$0xff]
        %v843 = vld [vmem:[#allocation8 + $0x170] sm:$0xff]
        %v844 = vld [vmem:[#allocation8 + $0x178] sm:$0xff]
        %v845 = vld [vmem:[#allocation8 + $0x180] sm:$0xff]
        %v846 = vld [vmem:[#allocation8 + $0x188] sm:$0xff]
        %v847 = vld [vmem:[#allocation8 + $0x190] sm:$0xff]
        %v848 = vld [vmem:[#allocation8 + $0x198] sm:$0xff]
        %v849 = vld [vmem:[#allocation8 + $0x1a0] sm:$0xff]
        %v850 = vld [vmem:[#allocation8 + $0x1a8] sm:$0xff]
        %v851 = vld [vmem:[#allocation8 + $0x1b0] sm:$0xff]
        %v852 = vld [vmem:[#allocation8 + $0x1b8] sm:$0xff]
        %v853 = vld [vmem:[#allocation8 + $0x1c0] sm:$0xff]
        %v854 = vld [vmem:[#allocation8 + $0x1c8] sm:$0xff]
        %v855 = vld [vmem:[#allocation8 + $0x1d0] sm:$0xff]
        %v856 = vld [vmem:[#allocation8 + $0x1d8] sm:$0xff]
        %v857 = vld [vmem:[#allocation8 + $0x1e0] sm:$0xff]
        %v858 = vld [vmem:[#allocation8 + $0x1e8] sm:$0xff]
        %v859 = vld [vmem:[#allocation8 + $0x1f0] sm:$0xff]
        %v860 = vld [vmem:[#allocation8 + $0x1f8] sm:$0xff]
        %v861 = vld [vmem:[%s4] sm:$0x3]
        %v863 = vperm.slane %v861, 0
        %v864 = vperm.slane %v861, 1
        %v931 = vunpack.c.l.b16 %v797
        %v932 = vunpack.c.h.b16 %v797
        %v933 = vunpack.c.l.b16 %v798
        %v934 = vunpack.c.h.b16 %v798
        %v935 = vunpack.c.l.b16 %v799
        %v936 = vunpack.c.h.b16 %v799
        %v937 = vunpack.c.l.b16 %v800
        %v938 = vunpack.c.h.b16 %v800
        %v939 = vunpack.c.l.b16 %v801
        %v940 = vunpack.c.h.b16 %v801
        %v941 = vunpack.c.l.b16 %v802
        %v942 = vunpack.c.h.b16 %v802
        %v943 = vunpack.c.l.b16 %v803
        %v944 = vunpack.c.h.b16 %v803
        %v945 = vunpack.c.l.b16 %v804
        %v946 = vunpack.c.h.b16 %v804
        %v947 = vunpack.c.l.b16 %v805
        %v948 = vunpack.c.h.b16 %v805
        %v949 = vunpack.c.l.b16 %v806
        %v950 = vunpack.c.h.b16 %v806
        %v951 = vunpack.c.l.b16 %v807
        %v952 = vunpack.c.h.b16 %v807
        %v953 = vunpack.c.l.b16 %v808
        %v954 = vunpack.c.h.b16 %v808
        %v955 = vunpack.c.l.b16 %v809
        %v956 = vunpack.c.h.b16 %v809
        %v957 = vunpack.c.l.b16 %v810
        %v958 = vunpack.c.h.b16 %v810
        %v959 = vunpack.c.l.b16 %v811
        %v960 = vunpack.c.h.b16 %v811
        %v961 = vunpack.c.l.b16 %v812
        %v962 = vunpack.c.h.b16 %v812
        %v963 = vunpack.c.l.b16 %v813
        %v964 = vunpack.c.h.b16 %v813
        %v965 = vunpack.c.l.b16 %v814
        %v966 = vunpack.c.h.b16 %v814
        %v967 = vunpack.c.l.b16 %v815
        %v968 = vunpack.c.h.b16 %v815
        %v969 = vunpack.c.l.b16 %v816
        %v970 = vunpack.c.h.b16 %v816
        %v971 = vunpack.c.l.b16 %v817
        %v972 = vunpack.c.h.b16 %v817
        %v973 = vunpack.c.l.b16 %v818
        %v974 = vunpack.c.h.b16 %v818
        %v975 = vunpack.c.l.b16 %v819
        %v976 = vunpack.c.h.b16 %v819
        %v977 = vunpack.c.l.b16 %v820
        %v978 = vunpack.c.h.b16 %v820
        %v979 = vunpack.c.l.b16 %v821
        %v980 = vunpack.c.h.b16 %v821
        %v981 = vunpack.c.l.b16 %v822
        %v982 = vunpack.c.h.b16 %v822
        %v983 = vunpack.c.l.b16 %v823
        %v984 = vunpack.c.h.b16 %v823
        %v985 = vunpack.c.l.b16 %v824
        %v986 = vunpack.c.h.b16 %v824
        %v987 = vunpack.c.l.b16 %v825
        %v988 = vunpack.c.h.b16 %v825
        %v989 = vunpack.c.l.b16 %v826
        %v990 = vunpack.c.h.b16 %v826
        %v991 = vunpack.c.l.b16 %v827
        %v992 = vunpack.c.h.b16 %v827
        %v993 = vunpack.c.l.b16 %v828
        %v994 = vunpack.c.h.b16 %v828
        %v995 = vunpack.c.l.b16 %v829
        %v996 = vunpack.c.h.b16 %v829
        %v997 = vunpack.c.l.b16 %v830
        %v998 = vunpack.c.h.b16 %v830
        %v999 = vunpack.c.l.b16 %v831
        %v1000 = vunpack.c.h.b16 %v831
        %v1001 = vunpack.c.l.b16 %v832
        %v1002 = vunpack.c.h.b16 %v832
        %v1003 = vunpack.c.l.b16 %v833
        %v1004 = vunpack.c.h.b16 %v833
        %v1005 = vunpack.c.l.b16 %v834
        %v1006 = vunpack.c.h.b16 %v834
        %v1007 = vunpack.c.l.b16 %v835
        %v1008 = vunpack.c.h.b16 %v835
        %v1009 = vunpack.c.l.b16 %v836
        %v1010 = vunpack.c.h.b16 %v836
        %v1011 = vunpack.c.l.b16 %v837
        %v1012 = vunpack.c.h.b16 %v837
        %v1013 = vunpack.c.l.b16 %v838
        %v1014 = vunpack.c.h.b16 %v838
        %v1015 = vunpack.c.l.b16 %v839
        %v1016 = vunpack.c.h.b16 %v839
        %v1017 = vunpack.c.l.b16 %v840
        %v1018 = vunpack.c.h.b16 %v840
        %v1019 = vunpack.c.l.b16 %v841
        %v1020 = vunpack.c.h.b16 %v841
        %v1021 = vunpack.c.l.b16 %v842
        %v1022 = vunpack.c.h.b16 %v842
        %v1023 = vunpack.c.l.b16 %v843
        %v1024 = vunpack.c.h.b16 %v843
        %v1025 = vunpack.c.l.b16 %v844
        %v1026 = vunpack.c.h.b16 %v844
        %v1027 = vunpack.c.l.b16 %v845
        %v1028 = vunpack.c.h.b16 %v845
        %v1029 = vunpack.c.l.b16 %v846
        %v1030 = vunpack.c.h.b16 %v846
        %v1031 = vunpack.c.l.b16 %v847
        %v1032 = vunpack.c.h.b16 %v847
        %v1033 = vunpack.c.l.b16 %v848
        %v1034 = vunpack.c.h.b16 %v848
        %v1035 = vunpack.c.l.b16 %v849
        %v1036 = vunpack.c.h.b16 %v849
        %v1037 = vunpack.c.l.b16 %v850
        %v1038 = vunpack.c.h.b16 %v850
        %v1039 = vunpack.c.l.b16 %v851
        %v1040 = vunpack.c.h.b16 %v851
        %v1041 = vunpack.c.l.b16 %v852
        %v1042 = vunpack.c.h.b16 %v852
        %v1043 = vunpack.c.l.b16 %v853
        %v1044 = vunpack.c.h.b16 %v853
        %v1045 = vunpack.c.l.b16 %v854
        %v1046 = vunpack.c.h.b16 %v854
        %v1047 = vunpack.c.l.b16 %v855
        %v1048 = vunpack.c.h.b16 %v855
        %v1049 = vunpack.c.l.b16 %v856
        %v1050 = vunpack.c.h.b16 %v856
        %v1051 = vunpack.c.l.b16 %v857
        %v1052 = vunpack.c.h.b16 %v857
        %v1053 = vunpack.c.l.b16 %v858
        %v1054 = vunpack.c.h.b16 %v858
        %v1055 = vunpack.c.l.b16 %v859
        %v1056 = vunpack.c.h.b16 %v859
        %v1057 = vunpack.c.l.b16 %v860
        %v1058 = vunpack.c.h.b16 %v860
        %v1059 = vpack.c.b16 %v933, %v931
        %v1060 = vpack.c.b16 %v934, %v932
        %v1061 = vpack.c.b16 %v937, %v935
        %v1062 = vpack.c.b16 %v938, %v936
        %v1063 = vpack.c.b16 %v941, %v939
        %v1064 = vpack.c.b16 %v942, %v940
        %v1065 = vpack.c.b16 %v945, %v943
        %v1066 = vpack.c.b16 %v946, %v944
        %v1067 = vpack.c.b16 %v949, %v947
        %v1068 = vpack.c.b16 %v950, %v948
        %v1069 = vpack.c.b16 %v953, %v951
        %v1070 = vpack.c.b16 %v954, %v952
        %v1071 = vpack.c.b16 %v957, %v955
        %v1072 = vpack.c.b16 %v958, %v956
        %v1073 = vpack.c.b16 %v961, %v959
        %v1074 = vpack.c.b16 %v962, %v960
        %v1075 = vpack.c.b16 %v965, %v963
        %v1076 = vpack.c.b16 %v966, %v964
        %v1077 = vpack.c.b16 %v969, %v967
        %v1078 = vpack.c.b16 %v970, %v968
        %v1079 = vpack.c.b16 %v973, %v971
        %v1080 = vpack.c.b16 %v974, %v972
        %v1081 = vpack.c.b16 %v977, %v975
        %v1082 = vpack.c.b16 %v978, %v976
        %v1083 = vpack.c.b16 %v981, %v979
        %v1084 = vpack.c.b16 %v982, %v980
        %v1085 = vpack.c.b16 %v985, %v983
        %v1086 = vpack.c.b16 %v986, %v984
        %v1087 = vpack.c.b16 %v989, %v987
        %v1088 = vpack.c.b16 %v990, %v988
        %v1089 = vpack.c.b16 %v993, %v991
        %v1090 = vpack.c.b16 %v994, %v992
        %v1091 = vpack.c.b16 %v997, %v995
        %v1092 = vpack.c.b16 %v998, %v996
        %v1093 = vpack.c.b16 %v1001, %v999
        %v1094 = vpack.c.b16 %v1002, %v1000
        %v1095 = vpack.c.b16 %v1005, %v1003
        %v1096 = vpack.c.b16 %v1006, %v1004
        %v1097 = vpack.c.b16 %v1009, %v1007
        %v1098 = vpack.c.b16 %v1010, %v1008
        %v1099 = vpack.c.b16 %v1013, %v1011
        %v1100 = vpack.c.b16 %v1014, %v1012
        %v1101 = vpack.c.b16 %v1017, %v1015
        %v1102 = vpack.c.b16 %v1018, %v1016
        %v1103 = vpack.c.b16 %v1021, %v1019
        %v1104 = vpack.c.b16 %v1022, %v1020
        %v1105 = vpack.c.b16 %v1025, %v1023
        %v1106 = vpack.c.b16 %v1026, %v1024
        %v1107 = vpack.c.b16 %v1029, %v1027
        %v1108 = vpack.c.b16 %v1030, %v1028
        %v1109 = vpack.c.b16 %v1033, %v1031
        %v1110 = vpack.c.b16 %v1034, %v1032
        %v1111 = vpack.c.b16 %v1037, %v1035
        %v1112 = vpack.c.b16 %v1038, %v1036
        %v1113 = vpack.c.b16 %v1041, %v1039
        %v1114 = vpack.c.b16 %v1042, %v1040
        %v1115 = vpack.c.b16 %v1045, %v1043
        %v1116 = vpack.c.b16 %v1046, %v1044
        %v1117 = vpack.c.b16 %v1049, %v1047
        %v1118 = vpack.c.b16 %v1050, %v1048
        %v1119 = vpack.c.b16 %v1053, %v1051
        %v1120 = vpack.c.b16 %v1054, %v1052
        %v1121 = vpack.c.b16 %v1057, %v1055
        %v1122 = vpack.c.b16 %v1058, %v1056
        %1187 = vmatpush.bf16.msra.mxu0 %v1073
        %1188 = vmatpush.bf16.msra.mxu0 %v1071
        %1189 = vmatpush.bf16.msra.mxu0 %v1069
        %1190 = vmatpush.bf16.msra.mxu0 %v1067
        %1191 = vmatpush.bf16.msra.mxu0 %v1065
        %1192 = vmatpush.bf16.msra.mxu0 %v1063
        %1193 = vmatpush.bf16.msra.mxu0 %v1061
        %1194 = vmatpush.bf16.msra.mxu0 %v1059
        %1195 = vmatmul.bf16.gmra.mxu0 %v793
        %v1196 = vpop.f32.mrf.mxu0
        %v1197 = vadd.f32 %v863, %v1196
        %v1198 = vpop.f32.mrf.mxu0
        %v1199 = vadd.f32 %v863, %v1198
        %1200 = vdwg.mxu0
        %1201 = vmatpush.bf16.msra.mxu0 %v1089
        %1202 = vmatpush.bf16.msra.mxu0 %v1087
        %1203 = vmatpush.bf16.msra.mxu0 %v1085
        %1204 = vmatpush.bf16.msra.mxu0 %v1083
        %1205 = vmatpush.bf16.msra.mxu0 %v1081
        %1206 = vmatpush.bf16.msra.mxu0 %v1079
        %1207 = vmatpush.bf16.msra.mxu0 %v1077
        %1208 = vmatpush.bf16.msra.mxu0 %v1075
        %1209 = vmatmul.bf16.gmra.mxu0 %v794
        %v1210 = vpop.f32.mrf.mxu0
        %v1211 = vadd.f32 %v1197, %v1210
        %v1212 = vpop.f32.mrf.mxu0
        %v1213 = vadd.f32 %v1199, %v1212
        %1214 = vdwg.mxu0
        %1215 = vmatpush.bf16.msra.mxu0 %v1105
        %1216 = vmatpush.bf16.msra.mxu0 %v1103
        %1217 = vmatpush.bf16.msra.mxu0 %v1101
        %1218 = vmatpush.bf16.msra.mxu0 %v1099
        %1219 = vmatpush.bf16.msra.mxu0 %v1097
        %1220 = vmatpush.bf16.msra.mxu0 %v1095
        %1221 = vmatpush.bf16.msra.mxu0 %v1093
        %1222 = vmatpush.bf16.msra.mxu0 %v1091
        %1223 = vmatmul.bf16.gmra.mxu0 %v795
        %v1224 = vpop.f32.mrf.mxu0
        %v1225 = vadd.f32 %v1211, %v1224
        %v1226 = vpop.f32.mrf.mxu0
        %v1227 = vadd.f32 %v1213, %v1226
        %1228 = vdwg.mxu0
        %1229 = vmatpush.bf16.msra.mxu0 %v1121
        %1230 = vmatpush.bf16.msra.mxu0 %v1119
        %1231 = vmatpush.bf16.msra.mxu0 %v1117
        %1232 = vmatpush.bf16.msra.mxu0 %v1115
        %1233 = vmatpush.bf16.msra.mxu0 %v1113
        %1234 = vmatpush.bf16.msra.mxu0 %v1111
        %1235 = vmatpush.bf16.msra.mxu0 %v1109
        %1236 = vmatpush.bf16.msra.mxu0 %v1107
        %1237 = vmatmul.bf16.gmra.mxu0 %v796
        %v1238 = vpop.f32.mrf.mxu0
        %v1239 = vadd.f32 %v1225, %v1238
        %v1240 = vpop.f32.mrf.mxu0
        %v1241 = vadd.f32 %v1227, %v1240
        %1242 = vdwg.mxu0
        %1243 = vmatpush.bf16.msra.mxu0 %v1074
        %1244 = vmatpush.bf16.msra.mxu0 %v1072
        %1245 = vmatpush.bf16.msra.mxu0 %v1070
        %1246 = vmatpush.bf16.msra.mxu0 %v1068
        %1247 = vmatpush.bf16.msra.mxu0 %v1066
        %1248 = vmatpush.bf16.msra.mxu0 %v1064
        %1249 = vmatpush.bf16.msra.mxu0 %v1062
        %1250 = vmatpush.bf16.msra.mxu0 %v1060
        %1251 = vmatmul.bf16.gmra.mxu0 %v793
        %v1252 = vpop.f32.mrf.mxu0
        %v1253 = vadd.f32 %v864, %v1252
        %v1254 = vpop.f32.mrf.mxu0
        %v1255 = vadd.f32 %v864, %v1254
        %1256 = vdwg.mxu0
        %1257 = vmatpush.bf16.msra.mxu0 %v1090
        %1258 = vmatpush.bf16.msra.mxu0 %v1088
        %1259 = vmatpush.bf16.msra.mxu0 %v1086
        %1260 = vmatpush.bf16.msra.mxu0 %v1084
        %1261 = vmatpush.bf16.msra.mxu0 %v1082
        %1262 = vmatpush.bf16.msra.mxu0 %v1080
        %1263 = vmatpush.bf16.msra.mxu0 %v1078
        %1264 = vmatpush.bf16.msra.mxu0 %v1076
        %1265 = vmatmul.bf16.gmra.mxu0 %v794
        %v1266 = vpop.f32.mrf.mxu0
        %v1267 = vadd.f32 %v1253, %v1266
        %v1268 = vpop.f32.mrf.mxu0
        %v1269 = vadd.f32 %v1255, %v1268
        %1270 = vdwg.mxu0
        %1271 = vmatpush.bf16.msra.mxu0 %v1106
        %1272 = vmatpush.bf16.msra.mxu0 %v1104
        %1273 = vmatpush.bf16.msra.mxu0 %v1102
        %1274 = vmatpush.bf16.msra.mxu0 %v1100
        %1275 = vmatpush.bf16.msra.mxu0 %v1098
        %1276 = vmatpush.bf16.msra.mxu0 %v1096
        %1277 = vmatpush.bf16.msra.mxu0 %v1094
        %1278 = vmatpush.bf16.msra.mxu0 %v1092
        %1279 = vmatmul.bf16.gmra.mxu0 %v795
        %v1280 = vpop.f32.mrf.mxu0
        %v1281 = vadd.f32 %v1267, %v1280
        %v1282 = vpop.f32.mrf.mxu0
        %v1283 = vadd.f32 %v1269, %v1282
        %1284 = vdwg.mxu0
        %1285 = vmatpush.bf16.msra.mxu0 %v1122
        %1286 = vmatpush.bf16.msra.mxu0 %v1120
        %1287 = vmatpush.bf16.msra.mxu0 %v1118
        %1288 = vmatpush.bf16.msra.mxu0 %v1116
        %1289 = vmatpush.bf16.msra.mxu0 %v1114
        %1290 = vmatpush.bf16.msra.mxu0 %v1112
        %1291 = vmatpush.bf16.msra.mxu0 %v1110
        %1292 = vmatpush.bf16.msra.mxu0 %v1108
        %1293 = vmatmul.bf16.gmra.mxu0 %v796
        %v1294 = vpop.f32.mrf.mxu0
        %v1295 = vadd.f32 %v1281, %v1294
        %v1296 = vpop.f32.mrf.mxu0
        %v1297 = vadd.f32 %v1283, %v1296
        %1298 = vdwg.mxu0
        %v1299 = vpack.c.bf16 %v1295, %v1239
        %v1300 = vpack.c.bf16 %v1297, %v1241
        %v1301 = vunpack.c.l.bf16 %v1299
        %v1302 = vunpack.c.h.bf16 %v1299
        %v1303 = vunpack.c.l.bf16 %v1300
        %v1304 = vunpack.c.h.bf16 %v1300
        %v1305 = vmul.f32 %v1301, 0.5
        %v1306 = vmul.f32 %v1302, 0.5
        %v1307 = vmul.f32 %v1303, 0.5
        %v1308 = vmul.f32 %v1304, 0.5
        %v1309 = vpack.c.bf16 %v1306, %v1305
        %v1310 = vpack.c.bf16 %v1308, %v1307
        %v1311 = vunpack.c.l.bf16 %v1309
        %v1312 = vunpack.c.h.bf16 %v1309
        %v1313 = vunpack.c.l.bf16 %v1310
        %v1314 = vunpack.c.h.bf16 %v1310
        %v1315 = vtanh.pop %v1311
        %v1316 = vtanh.pop %v1312
        %v1317 = vtanh.pop %v1313
        %v1318 = vtanh.pop %v1314
        %v1319 = vpack.c.bf16 %v1316, %v1315
        %v1320 = vpack.c.bf16 %v1318, %v1317
        %v1321 = vunpack.c.l.bf16 %v1319
        %v1322 = vunpack.c.h.bf16 %v1319
        %v1323 = vunpack.c.l.bf16 %v1320
        %v1324 = vunpack.c.h.bf16 %v1320
        %v1325 = vmul.f32 %v1321, 0.5
        %v1326 = vmul.f32 %v1322, 0.5
        %v1327 = vmul.f32 %v1323, 0.5
        %v1328 = vmul.f32 %v1324, 0.5
        %v1329 = vpack.c.bf16 %v1326, %v1325
        %v1330 = vpack.c.bf16 %v1328, %v1327
        %v1331 = vunpack.c.l.bf16 %v1329
        %v1332 = vunpack.c.h.bf16 %v1329
        %v1333 = vunpack.c.l.bf16 %v1330
        %v1334 = vunpack.c.h.bf16 %v1330
        %v1335 = vadd.f32 %v1331, 0.5
        %v1336 = vadd.f32 %v1332, 0.5
        %v1337 = vadd.f32 %v1333, 0.5
        %v1338 = vadd.f32 %v1334, 0.5
        %v1339 = vpack.c.bf16 %v1337, %v1335
        %v1340 = vpack.c.bf16 %v1338, %v1336
        %v1341 = vld [vmem:[#allocation10] sm:$0xf]
        %v1342 = vld [vmem:[#allocation10 + $0x4] sm:$0xf]
        %v1343 = vld [vmem:[#allocation10 + $0x8] sm:$0xf]
        %v1344 = vld [vmem:[#allocation10 + $0xc] sm:$0xf]
        %v1345 = vld [vmem:[#allocation10 + $0x10] sm:$0xf]
        %v1346 = vld [vmem:[#allocation10 + $0x14] sm:$0xf]
        %v1347 = vld [vmem:[#allocation10 + $0x18] sm:$0xf]
        %v1348 = vld [vmem:[#allocation10 + $0x1c] sm:$0xf]
        %v1349 = vld [vmem:[#allocation10 + $0x20] sm:$0xf]
        %v1350 = vld [vmem:[#allocation10 + $0x24] sm:$0xf]
        %v1351 = vld [vmem:[#allocation10 + $0x28] sm:$0xf]
        %v1352 = vld [vmem:[#allocation10 + $0x2c] sm:$0xf]
        %v1353 = vld [vmem:[#allocation10 + $0x30] sm:$0xf]
        %v1354 = vld [vmem:[#allocation10 + $0x34] sm:$0xf]
        %v1355 = vld [vmem:[#allocation10 + $0x38] sm:$0xf]
        %v1356 = vld [vmem:[#allocation10 + $0x3c] sm:$0xf]
        %v1357 = vld [vmem:[#allocation10 + $0x40] sm:$0xf]
        %v1358 = vld [vmem:[#allocation10 + $0x44] sm:$0xf]
        %v1359 = vld [vmem:[#allocation10 + $0x48] sm:$0xf]
        %v1360 = vld [vmem:[#allocation10 + $0x4c] sm:$0xf]
        %v1361 = vld [vmem:[#allocation10 + $0x50] sm:$0xf]
        %v1362 = vld [vmem:[#allocation10 + $0x54] sm:$0xf]
        %v1363 = vld [vmem:[#allocation10 + $0x58] sm:$0xf]
        %v1364 = vld [vmem:[#allocation10 + $0x5c] sm:$0xf]
        %v1365 = vld [vmem:[#allocation10 + $0x60] sm:$0xf]
        %v1366 = vld [vmem:[#allocation10 + $0x64] sm:$0xf]
        %v1367 = vld [vmem:[#allocation10 + $0x68] sm:$0xf]
        %v1368 = vld [vmem:[#allocation10 + $0x6c] sm:$0xf]
        %v1369 = vld [vmem:[#allocation10 + $0x70] sm:$0xf]
        %v1370 = vld [vmem:[#allocation10 + $0x74] sm:$0xf]
        %v1371 = vld [vmem:[#allocation10 + $0x78] sm:$0xf]
        %v1372 = vld [vmem:[#allocation10 + $0x7c] sm:$0xf]
        %v1373 = vld [vmem:[%s6] sm:$0x1]
        %v1375 = vperm.slane %v1373, 0
        %v1409 = vunpack.c.l.b16 %v1341
        %v1410 = vunpack.c.l.b16 %v1342
        %v1411 = vunpack.c.l.b16 %v1343
        %v1412 = vunpack.c.l.b16 %v1344
        %v1413 = vunpack.c.l.b16 %v1345
        %v1414 = vunpack.c.l.b16 %v1346
        %v1415 = vunpack.c.l.b16 %v1347
        %v1416 = vunpack.c.l.b16 %v1348
        %v1417 = vunpack.c.l.b16 %v1349
        %v1418 = vunpack.c.l.b16 %v1350
        %v1419 = vunpack.c.l.b16 %v1351
        %v1420 = vunpack.c.l.b16 %v1352
        %v1421 = vunpack.c.l.b16 %v1353
        %v1422 = vunpack.c.l.b16 %v1354
        %v1423 = vunpack.c.l.b16 %v1355
        %v1424 = vunpack.c.l.b16 %v1356
        %v1425 = vunpack.c.l.b16 %v1357
        %v1426 = vunpack.c.l.b16 %v1358
        %v1427 = vunpack.c.l.b16 %v1359
        %v1428 = vunpack.c.l.b16 %v1360
        %v1429 = vunpack.c.l.b16 %v1361
        %v1430 = vunpack.c.l.b16 %v1362
        %v1431 = vunpack.c.l.b16 %v1363
        %v1432 = vunpack.c.l.b16 %v1364
        %v1433 = vunpack.c.l.b16 %v1365
        %v1434 = vunpack.c.l.b16 %v1366
        %v1435 = vunpack.c.l.b16 %v1367
        %v1436 = vunpack.c.l.b16 %v1368
        %v1437 = vunpack.c.l.b16 %v1369
        %v1438 = vunpack.c.l.b16 %v1370
        %v1439 = vunpack.c.l.b16 %v1371
        %v1440 = vunpack.c.l.b16 %v1372
        %v1441 = vpack.c.b16 %v1410, %v1409
        %v1442 = vpack.c.b16 %v1412, %v1411
        %v1443 = vpack.c.b16 %v1414, %v1413
        %v1444 = vpack.c.b16 %v1416, %v1415
        %v1445 = vpack.c.b16 %v1418, %v1417
        %v1446 = vpack.c.b16 %v1420, %v1419
        %v1447 = vpack.c.b16 %v1422, %v1421
        %v1448 = vpack.c.b16 %v1424, %v1423
        %v1449 = vpack.c.b16 %v1426, %v1425
        %v1450 = vpack.c.b16 %v1428, %v1427
        %v1451 = vpack.c.b16 %v1430, %v1429
        %v1452 = vpack.c.b16 %v1432, %v1431
        %v1453 = vpack.c.b16 %v1434, %v1433
        %v1454 = vpack.c.b16 %v1436, %v1435
        %v1455 = vpack.c.b16 %v1438, %v1437
        %v1456 = vpack.c.b16 %v1440, %v1439
        %1473 = vmatpush.bf16.msra.mxu0 %v1448
        %1474 = vmatpush.bf16.msra.mxu0 %v1447
        %1475 = vmatpush.bf16.msra.mxu0 %v1446
        %1476 = vmatpush.bf16.msra.mxu0 %v1445
        %1477 = vmatpush.bf16.msra.mxu0 %v1444
        %1478 = vmatpush.bf16.msra.mxu0 %v1443
        %1479 = vmatpush.bf16.msra.mxu0 %v1442
        %1480 = vmatpush.bf16.msra.mxu0 %v1441
        %1481 = vmatmul.bf16.gmra.mxu0 %v1339
        %v1482 = vpop.f32.mrf.mxu0
        %v1483 = vadd.f32 %v1375, %v1482
        %v1484 = vpop.f32.mrf.mxu0
        %v1485 = vadd.f32 %v1375, %v1484
        %1486 = vdwg.mxu0
        %1487 = vmatpush.bf16.msra.mxu0 %v1456
        %1488 = vmatpush.bf16.msra.mxu0 %v1455
        %1489 = vmatpush.bf16.msra.mxu0 %v1454
        %1490 = vmatpush.bf16.msra.mxu0 %v1453
        %1491 = vmatpush.bf16.msra.mxu0 %v1452
        %1492 = vmatpush.bf16.msra.mxu0 %v1451
        %1493 = vmatpush.bf16.msra.mxu0 %v1450
        %1494 = vmatpush.bf16.msra.mxu0 %v1449
        %1495 = vmatmul.bf16.gmra.mxu0 %v1340
        %v1496 = vpop.f32.mrf.mxu0
        %v1497 = vadd.f32 %v1483, %v1496
        %v1498 = vpop.f32.mrf.mxu0
        %v1499 = vadd.f32 %v1485, %v1498
        %1500 = vdwg.mxu0
        %v1501 = vpack.c.bf16 %v1497, %v1497
        %v1502 = vpack.c.bf16 %v1499, %v1499
        %v1503 = vunpack.c.l.bf16 %v1501
        %v1504 = vunpack.c.l.bf16 %v1502
        %v1505 = vmul.f32 %v1503, 0.5
        %v1506 = vmul.f32 %v1504, 0.5
        %v1507 = vpack.c.bf16 %v1505, %v1505
        %v1508 = vpack.c.bf16 %v1506, %v1506
        %v1509 = vunpack.c.l.bf16 %v1507
        %v1510 = vunpack.c.l.bf16 %v1508
        %v1511 = vtanh.pop %v1509
        %v1512 = vtanh.pop %v1510
        %v1513 = vpack.c.bf16 %v1511, %v1511
        %v1514 = vpack.c.bf16 %v1512, %v1512
        %v1515 = vunpack.c.l.bf16 %v1513
        %v1516 = vunpack.c.l.bf16 %v1514
        %v1517 = vmul.f32 %v1515, 0.5
        %v1518 = vmul.f32 %v1516, 0.5
        %v1519 = vpack.c.bf16 %v1517, %v1517
        %v1520 = vpack.c.bf16 %v1518, %v1518
        %v1521 = vunpack.c.l.bf16 %v1519
        %v1522 = vunpack.c.l.bf16 %v1520
        %v1523 = vadd.f32 %v1521, 0.5
        %v1524 = vadd.f32 %v1522, 0.5
        %v1525 = vpack.c.bf16 %v1524, %v1523
        %v1526 = vld [vmem:[#allocation11] sm:$0xff]
        %v1527 = vld [vmem:[#allocation11 + $0x8] sm:$0xff]
        %v1528 = vld [vmem:[#allocation11 + $0x10] sm:$0xff]
        %v1529 = vld [vmem:[#allocation11 + $0x18] sm:$0xff]
        %v1530 = vld [vmem:[#allocation11 + $0x20] sm:$0xff]
        %v1531 = vld [vmem:[#allocation11 + $0x28] sm:$0xff]
        %v1532 = vld [vmem:[#allocation11 + $0x30] sm:$0xff]
        %v1533 = vld [vmem:[#allocation11 + $0x38] sm:$0xff]
        %v1534 = vld [vmem:[#allocation11 + $0x40] sm:$0xff]
        %v1535 = vld [vmem:[#allocation11 + $0x48] sm:$0xff]
        %v1536 = vld [vmem:[#allocation11 + $0x50] sm:$0xff]
        %v1537 = vld [vmem:[#allocation11 + $0x58] sm:$0xff]
        %v1538 = vld [vmem:[#allocation11 + $0x60] sm:$0xff]
        %v1539 = vld [vmem:[#allocation11 + $0x68] sm:$0xff]
        %v1540 = vld [vmem:[#allocation11 + $0x70] sm:$0xff]
        %v1541 = vld [vmem:[#allocation11 + $0x78] sm:$0xff]
        %v1542 = vld [vmem:[#allocation13] sm:$0x3]
        %v1544 = vperm.slane %v1542, 0
        %v1545 = vperm.slane %v1542, 1
        %v1564 = vunpack.c.l.b16 %v1526
        %v1565 = vunpack.c.h.b16 %v1526
        %v1566 = vunpack.c.l.b16 %v1527
        %v1567 = vunpack.c.h.b16 %v1527
        %v1568 = vunpack.c.l.b16 %v1528
        %v1569 = vunpack.c.h.b16 %v1528
        %v1570 = vunpack.c.l.b16 %v1529
        %v1571 = vunpack.c.h.b16 %v1529
        %v1572 = vunpack.c.l.b16 %v1530
        %v1573 = vunpack.c.h.b16 %v1530
        %v1574 = vunpack.c.l.b16 %v1531
        %v1575 = vunpack.c.h.b16 %v1531
        %v1576 = vunpack.c.l.b16 %v1532
        %v1577 = vunpack.c.h.b16 %v1532
        %v1578 = vunpack.c.l.b16 %v1533
        %v1579 = vunpack.c.h.b16 %v1533
        %v1580 = vunpack.c.l.b16 %v1534
        %v1581 = vunpack.c.h.b16 %v1534
        %v1582 = vunpack.c.l.b16 %v1535
        %v1583 = vunpack.c.h.b16 %v1535
        %v1584 = vunpack.c.l.b16 %v1536
        %v1585 = vunpack.c.h.b16 %v1536
        %v1586 = vunpack.c.l.b16 %v1537
        %v1587 = vunpack.c.h.b16 %v1537
        %v1588 = vunpack.c.l.b16 %v1538
        %v1589 = vunpack.c.h.b16 %v1538
        %v1590 = vunpack.c.l.b16 %v1539
        %v1591 = vunpack.c.h.b16 %v1539
        %v1592 = vunpack.c.l.b16 %v1540
        %v1593 = vunpack.c.h.b16 %v1540
        %v1594 = vunpack.c.l.b16 %v1541
        %v1595 = vunpack.c.h.b16 %v1541
        %v1596 = vpack.c.b16 %v1566, %v1564
        %v1597 = vpack.c.b16 %v1567, %v1565
        %v1598 = vpack.c.b16 %v1570, %v1568
        %v1599 = vpack.c.b16 %v1571, %v1569
        %v1600 = vpack.c.b16 %v1574, %v1572
        %v1601 = vpack.c.b16 %v1575, %v1573
        %v1602 = vpack.c.b16 %v1578, %v1576
        %v1603 = vpack.c.b16 %v1579, %v1577
        %v1604 = vpack.c.b16 %v1582, %v1580
        %v1605 = vpack.c.b16 %v1583, %v1581
        %v1606 = vpack.c.b16 %v1586, %v1584
        %v1607 = vpack.c.b16 %v1587, %v1585
        %v1608 = vpack.c.b16 %v1590, %v1588
        %v1609 = vpack.c.b16 %v1591, %v1589
        %v1610 = vpack.c.b16 %v1594, %v1592
        %v1611 = vpack.c.b16 %v1595, %v1593
        %1628 = vmatpush.bf16.msra.mxu0 %v1610
        %1629 = vmatpush.bf16.msra.mxu0 %v1608
        %1630 = vmatpush.bf16.msra.mxu0 %v1606
        %1631 = vmatpush.bf16.msra.mxu0 %v1604
        %1632 = vmatpush.bf16.msra.mxu0 %v1602
        %1633 = vmatpush.bf16.msra.mxu0 %v1600
        %1634 = vmatpush.bf16.msra.mxu0 %v1598
        %1635 = vmatpush.bf16.msra.mxu0 %v1596
        %1636 = vmatmul.bf16.gmra.mxu0 %v1525
        %v1637 = vpop.f32.mrf.mxu0
        %v1638 = vadd.f32 %v1544, %v1637
        %v1639 = vpop.f32.mrf.mxu0
        %v1640 = vadd.f32 %v1544, %v1639
        %1641 = vdwg.mxu0
        %1642 = vmatpush.bf16.msra.mxu0 %v1611
        %1643 = vmatpush.bf16.msra.mxu0 %v1609
        %1644 = vmatpush.bf16.msra.mxu0 %v1607
        %1645 = vmatpush.bf16.msra.mxu0 %v1605
        %1646 = vmatpush.bf16.msra.mxu0 %v1603
        %1647 = vmatpush.bf16.msra.mxu0 %v1601
        %1648 = vmatpush.bf16.msra.mxu0 %v1599
        %1649 = vmatpush.bf16.msra.mxu0 %v1597
        %1650 = vmatmul.bf16.gmra.mxu0 %v1525
        %v1651 = vpop.f32.mrf.mxu0
        %v1652 = vadd.f32 %v1545, %v1651
        %v1653 = vpop.f32.mrf.mxu0
        %v1654 = vadd.f32 %v1545, %v1653
        %1655 = vdwg.mxu0
        %v1656 = vpack.c.bf16 %v1652, %v1638
        %v1657 = vpack.c.bf16 %v1654, %v1640
        %v1658 = vunpack.c.l.bf16 %v1656
        %v1659 = vunpack.c.h.bf16 %v1656
        %v1660 = vunpack.c.l.bf16 %v1657
        %v1661 = vunpack.c.h.bf16 %v1657
        %v1662 = vmul.f32 %v1658, 0.5
        %v1663 = vmul.f32 %v1659, 0.5
        %v1664 = vmul.f32 %v1660, 0.5
        %v1665 = vmul.f32 %v1661, 0.5
        %v1666 = vpack.c.bf16 %v1663, %v1662
        %v1667 = vpack.c.bf16 %v1665, %v1664
        %v1668 = vunpack.c.l.bf16 %v1666
        %v1669 = vunpack.c.h.bf16 %v1666
        %v1670 = vunpack.c.l.bf16 %v1667
        %v1671 = vunpack.c.h.bf16 %v1667
        %v1672 = vtanh.pop %v1668
        %v1673 = vtanh.pop %v1669
        %v1674 = vtanh.pop %v1670
        %v1675 = vtanh.pop %v1671
        %v1676 = vpack.c.bf16 %v1673, %v1672
        %v1677 = vpack.c.bf16 %v1675, %v1674
        %v1678 = vunpack.c.l.bf16 %v1676
        %v1679 = vunpack.c.h.bf16 %v1676
        %v1680 = vunpack.c.l.bf16 %v1677
        %v1681 = vunpack.c.h.bf16 %v1677
        %v1682 = vmul.f32 %v1678, 0.5
        %v1683 = vmul.f32 %v1679, 0.5
        %v1684 = vmul.f32 %v1680, 0.5
        %v1685 = vmul.f32 %v1681, 0.5
        %v1686 = vpack.c.bf16 %v1683, %v1682
        %v1687 = vpack.c.bf16 %v1685, %v1684
        %v1688 = vunpack.c.l.bf16 %v1686
        %v1689 = vunpack.c.h.bf16 %v1686
        %v1690 = vunpack.c.l.bf16 %v1687
        %v1691 = vunpack.c.h.bf16 %v1687
        %v1692 = vadd.f32 %v1688, 0.5
        %v1693 = vadd.f32 %v1689, 0.5
        %v1694 = vadd.f32 %v1690, 0.5
        %v1695 = vadd.f32 %v1691, 0.5
        %v1696 = vpack.c.bf16 %v1694, %v1692
        %v1697 = vpack.c.bf16 %v1695, %v1693
        %v1698 = vld [vmem:[#allocation14] sm:$0xff]
        %v1699 = vld [vmem:[#allocation14 + $0x8] sm:$0xff]
        %v1700 = vld [vmem:[#allocation14 + $0x10] sm:$0xff]
        %v1701 = vld [vmem:[#allocation14 + $0x18] sm:$0xff]
        %v1702 = vld [vmem:[#allocation14 + $0x20] sm:$0xff]
        %v1703 = vld [vmem:[#allocation14 + $0x28] sm:$0xff]
        %v1704 = vld [vmem:[#allocation14 + $0x30] sm:$0xff]
        %v1705 = vld [vmem:[#allocation14 + $0x38] sm:$0xff]
        %v1706 = vld [vmem:[#allocation14 + $0x40] sm:$0xff]
        %v1707 = vld [vmem:[#allocation14 + $0x48] sm:$0xff]
        %v1708 = vld [vmem:[#allocation14 + $0x50] sm:$0xff]
        %v1709 = vld [vmem:[#allocation14 + $0x58] sm:$0xff]
        %v1710 = vld [vmem:[#allocation14 + $0x60] sm:$0xff]
        %v1711 = vld [vmem:[#allocation14 + $0x68] sm:$0xff]
        %v1712 = vld [vmem:[#allocation14 + $0x70] sm:$0xff]
        %v1713 = vld [vmem:[#allocation14 + $0x78] sm:$0xff]
        %v1714 = vld [vmem:[#allocation14 + $0x80] sm:$0xff]
        %v1715 = vld [vmem:[#allocation14 + $0x88] sm:$0xff]
        %v1716 = vld [vmem:[#allocation14 + $0x90] sm:$0xff]
        %v1717 = vld [vmem:[#allocation14 + $0x98] sm:$0xff]
        %v1718 = vld [vmem:[#allocation14 + $0xa0] sm:$0xff]
        %v1719 = vld [vmem:[#allocation14 + $0xa8] sm:$0xff]
        %v1720 = vld [vmem:[#allocation14 + $0xb0] sm:$0xff]
        %v1721 = vld [vmem:[#allocation14 + $0xb8] sm:$0xff]
        %v1722 = vld [vmem:[#allocation14 + $0xc0] sm:$0xff]
        %v1723 = vld [vmem:[#allocation14 + $0xc8] sm:$0xff]
        %v1724 = vld [vmem:[#allocation14 + $0xd0] sm:$0xff]
        %v1725 = vld [vmem:[#allocation14 + $0xd8] sm:$0xff]
        %v1726 = vld [vmem:[#allocation14 + $0xe0] sm:$0xff]
        %v1727 = vld [vmem:[#allocation14 + $0xe8] sm:$0xff]
        %v1728 = vld [vmem:[#allocation14 + $0xf0] sm:$0xff]
        %v1729 = vld [vmem:[#allocation14 + $0xf8] sm:$0xff]
        %v1730 = vld [vmem:[#allocation14 + $0x100] sm:$0xff]
        %v1731 = vld [vmem:[#allocation14 + $0x108] sm:$0xff]
        %v1732 = vld [vmem:[#allocation14 + $0x110] sm:$0xff]
        %v1733 = vld [vmem:[#allocation14 + $0x118] sm:$0xff]
        %v1734 = vld [vmem:[#allocation14 + $0x120] sm:$0xff]
        %v1735 = vld [vmem:[#allocation14 + $0x128] sm:$0xff]
        %v1736 = vld [vmem:[#allocation14 + $0x130] sm:$0xff]
        %v1737 = vld [vmem:[#allocation14 + $0x138] sm:$0xff]
        %v1738 = vld [vmem:[#allocation14 + $0x140] sm:$0xff]
        %v1739 = vld [vmem:[#allocation14 + $0x148] sm:$0xff]
        %v1740 = vld [vmem:[#allocation14 + $0x150] sm:$0xff]
        %v1741 = vld [vmem:[#allocation14 + $0x158] sm:$0xff]
        %v1742 = vld [vmem:[#allocation14 + $0x160] sm:$0xff]
        %v1743 = vld [vmem:[#allocation14 + $0x168] sm:$0xff]
        %v1744 = vld [vmem:[#allocation14 + $0x170] sm:$0xff]
        %v1745 = vld [vmem:[#allocation14 + $0x178] sm:$0xff]
        %v1746 = vld [vmem:[#allocation14 + $0x180] sm:$0xff]
        %v1747 = vld [vmem:[#allocation14 + $0x188] sm:$0xff]
        %v1748 = vld [vmem:[#allocation14 + $0x190] sm:$0xff]
        %v1749 = vld [vmem:[#allocation14 + $0x198] sm:$0xff]
        %v1750 = vld [vmem:[#allocation14 + $0x1a0] sm:$0xff]
        %v1751 = vld [vmem:[#allocation14 + $0x1a8] sm:$0xff]
        %v1752 = vld [vmem:[#allocation14 + $0x1b0] sm:$0xff]
        %v1753 = vld [vmem:[#allocation14 + $0x1b8] sm:$0xff]
        %v1754 = vld [vmem:[#allocation14 + $0x1c0] sm:$0xff]
        %v1755 = vld [vmem:[#allocation14 + $0x1c8] sm:$0xff]
        %v1756 = vld [vmem:[#allocation14 + $0x1d0] sm:$0xff]
        %v1757 = vld [vmem:[#allocation14 + $0x1d8] sm:$0xff]
        %v1758 = vld [vmem:[#allocation14 + $0x1e0] sm:$0xff]
        %v1759 = vld [vmem:[#allocation14 + $0x1e8] sm:$0xff]
        %v1760 = vld [vmem:[#allocation14 + $0x1f0] sm:$0xff]
        %v1761 = vld [vmem:[#allocation14 + $0x1f8] sm:$0xff]
        %v1762 = vld [vmem:[%s10] sm:$0xf]
        %v1764 = vperm.slane %v1762, 0
        %v1765 = vperm.slane %v1762, 1
        %v1766 = vperm.slane %v1762, 2
        %v1767 = vperm.slane %v1762, 3
        %v1836 = vunpack.c.l.b16 %v1698
        %v1837 = vunpack.c.h.b16 %v1698
        %v1838 = vunpack.c.l.b16 %v1699
        %v1839 = vunpack.c.h.b16 %v1699
        %v1840 = vunpack.c.l.b16 %v1700
        %v1841 = vunpack.c.h.b16 %v1700
        %v1842 = vunpack.c.l.b16 %v1701
        %v1843 = vunpack.c.h.b16 %v1701
        %v1844 = vunpack.c.l.b16 %v1702
        %v1845 = vunpack.c.h.b16 %v1702
        %v1846 = vunpack.c.l.b16 %v1703
        %v1847 = vunpack.c.h.b16 %v1703
        %v1848 = vunpack.c.l.b16 %v1704
        %v1849 = vunpack.c.h.b16 %v1704
        %v1850 = vunpack.c.l.b16 %v1705
        %v1851 = vunpack.c.h.b16 %v1705
        %v1852 = vunpack.c.l.b16 %v1706
        %v1853 = vunpack.c.h.b16 %v1706
        %v1854 = vunpack.c.l.b16 %v1707
        %v1855 = vunpack.c.h.b16 %v1707
        %v1856 = vunpack.c.l.b16 %v1708
        %v1857 = vunpack.c.h.b16 %v1708
        %v1858 = vunpack.c.l.b16 %v1709
        %v1859 = vunpack.c.h.b16 %v1709
        %v1860 = vunpack.c.l.b16 %v1710
        %v1861 = vunpack.c.h.b16 %v1710
        %v1862 = vunpack.c.l.b16 %v1711
        %v1863 = vunpack.c.h.b16 %v1711
        %v1864 = vunpack.c.l.b16 %v1712
        %v1865 = vunpack.c.h.b16 %v1712
        %v1866 = vunpack.c.l.b16 %v1713
        %v1867 = vunpack.c.h.b16 %v1713
        %v1868 = vunpack.c.l.b16 %v1714
        %v1869 = vunpack.c.h.b16 %v1714
        %v1870 = vunpack.c.l.b16 %v1715
        %v1871 = vunpack.c.h.b16 %v1715
        %v1872 = vunpack.c.l.b16 %v1716
        %v1873 = vunpack.c.h.b16 %v1716
        %v1874 = vunpack.c.l.b16 %v1717
        %v1875 = vunpack.c.h.b16 %v1717
        %v1876 = vunpack.c.l.b16 %v1718
        %v1877 = vunpack.c.h.b16 %v1718
        %v1878 = vunpack.c.l.b16 %v1719
        %v1879 = vunpack.c.h.b16 %v1719
        %v1880 = vunpack.c.l.b16 %v1720
        %v1881 = vunpack.c.h.b16 %v1720
        %v1882 = vunpack.c.l.b16 %v1721
        %v1883 = vunpack.c.h.b16 %v1721
        %v1884 = vunpack.c.l.b16 %v1722
        %v1885 = vunpack.c.h.b16 %v1722
        %v1886 = vunpack.c.l.b16 %v1723
        %v1887 = vunpack.c.h.b16 %v1723
        %v1888 = vunpack.c.l.b16 %v1724
        %v1889 = vunpack.c.h.b16 %v1724
        %v1890 = vunpack.c.l.b16 %v1725
        %v1891 = vunpack.c.h.b16 %v1725
        %v1892 = vunpack.c.l.b16 %v1726
        %v1893 = vunpack.c.h.b16 %v1726
        %v1894 = vunpack.c.l.b16 %v1727
        %v1895 = vunpack.c.h.b16 %v1727
        %v1896 = vunpack.c.l.b16 %v1728
        %v1897 = vunpack.c.h.b16 %v1728
        %v1898 = vunpack.c.l.b16 %v1729
        %v1899 = vunpack.c.h.b16 %v1729
        %v1900 = vunpack.c.l.b16 %v1730
        %v1901 = vunpack.c.h.b16 %v1730
        %v1902 = vunpack.c.l.b16 %v1731
        %v1903 = vunpack.c.h.b16 %v1731
        %v1904 = vunpack.c.l.b16 %v1732
        %v1905 = vunpack.c.h.b16 %v1732
        %v1906 = vunpack.c.l.b16 %v1733
        %v1907 = vunpack.c.h.b16 %v1733
        %v1908 = vunpack.c.l.b16 %v1734
        %v1909 = vunpack.c.h.b16 %v1734
        %v1910 = vunpack.c.l.b16 %v1735
        %v1911 = vunpack.c.h.b16 %v1735
        %v1912 = vunpack.c.l.b16 %v1736
        %v1913 = vunpack.c.h.b16 %v1736
        %v1914 = vunpack.c.l.b16 %v1737
        %v1915 = vunpack.c.h.b16 %v1737
        %v1916 = vunpack.c.l.b16 %v1738
        %v1917 = vunpack.c.h.b16 %v1738
        %v1918 = vunpack.c.l.b16 %v1739
        %v1919 = vunpack.c.h.b16 %v1739
        %v1920 = vunpack.c.l.b16 %v1740
        %v1921 = vunpack.c.h.b16 %v1740
        %v1922 = vunpack.c.l.b16 %v1741
        %v1923 = vunpack.c.h.b16 %v1741
        %v1924 = vunpack.c.l.b16 %v1742
        %v1925 = vunpack.c.h.b16 %v1742
        %v1926 = vunpack.c.l.b16 %v1743
        %v1927 = vunpack.c.h.b16 %v1743
        %v1928 = vunpack.c.l.b16 %v1744
        %v1929 = vunpack.c.h.b16 %v1744
        %v1930 = vunpack.c.l.b16 %v1745
        %v1931 = vunpack.c.h.b16 %v1745
        %v1932 = vunpack.c.l.b16 %v1746
        %v1933 = vunpack.c.h.b16 %v1746
        %v1934 = vunpack.c.l.b16 %v1747
        %v1935 = vunpack.c.h.b16 %v1747
        %v1936 = vunpack.c.l.b16 %v1748
        %v1937 = vunpack.c.h.b16 %v1748
        %v1938 = vunpack.c.l.b16 %v1749
        %v1939 = vunpack.c.h.b16 %v1749
        %v1940 = vunpack.c.l.b16 %v1750
        %v1941 = vunpack.c.h.b16 %v1750
        %v1942 = vunpack.c.l.b16 %v1751
        %v1943 = vunpack.c.h.b16 %v1751
        %v1944 = vunpack.c.l.b16 %v1752
        %v1945 = vunpack.c.h.b16 %v1752
        %v1946 = vunpack.c.l.b16 %v1753
        %v1947 = vunpack.c.h.b16 %v1753
        %v1948 = vunpack.c.l.b16 %v1754
        %v1949 = vunpack.c.h.b16 %v1754
        %v1950 = vunpack.c.l.b16 %v1755
        %v1951 = vunpack.c.h.b16 %v1755
        %v1952 = vunpack.c.l.b16 %v1756
        %v1953 = vunpack.c.h.b16 %v1756
        %v1954 = vunpack.c.l.b16 %v1757
        %v1955 = vunpack.c.h.b16 %v1757
        %v1956 = vunpack.c.l.b16 %v1758
        %v1957 = vunpack.c.h.b16 %v1758
        %v1958 = vunpack.c.l.b16 %v1759
        %v1959 = vunpack.c.h.b16 %v1759
        %v1960 = vunpack.c.l.b16 %v1760
        %v1961 = vunpack.c.h.b16 %v1760
        %v1962 = vunpack.c.l.b16 %v1761
        %v1963 = vunpack.c.h.b16 %v1761
        %v1964 = vpack.c.b16 %v1840, %v1836
        %v1965 = vpack.c.b16 %v1841, %v1837
        %v1966 = vpack.c.b16 %v1842, %v1838
        %v1967 = vpack.c.b16 %v1843, %v1839
        %v1968 = vpack.c.b16 %v1848, %v1844
        %v1969 = vpack.c.b16 %v1849, %v1845
        %v1970 = vpack.c.b16 %v1850, %v1846
        %v1971 = vpack.c.b16 %v1851, %v1847
        %v1972 = vpack.c.b16 %v1856, %v1852
        %v1973 = vpack.c.b16 %v1857, %v1853
        %v1974 = vpack.c.b16 %v1858, %v1854
        %v1975 = vpack.c.b16 %v1859, %v1855
        %v1976 = vpack.c.b16 %v1864, %v1860
        %v1977 = vpack.c.b16 %v1865, %v1861
        %v1978 = vpack.c.b16 %v1866, %v1862
        %v1979 = vpack.c.b16 %v1867, %v1863
        %v1980 = vpack.c.b16 %v1872, %v1868
        %v1981 = vpack.c.b16 %v1873, %v1869
        %v1982 = vpack.c.b16 %v1874, %v1870
        %v1983 = vpack.c.b16 %v1875, %v1871
        %v1984 = vpack.c.b16 %v1880, %v1876
        %v1985 = vpack.c.b16 %v1881, %v1877
        %v1986 = vpack.c.b16 %v1882, %v1878
        %v1987 = vpack.c.b16 %v1883, %v1879
        %v1988 = vpack.c.b16 %v1888, %v1884
        %v1989 = vpack.c.b16 %v1889, %v1885
        %v1990 = vpack.c.b16 %v1890, %v1886
        %v1991 = vpack.c.b16 %v1891, %v1887
        %v1992 = vpack.c.b16 %v1896, %v1892
        %v1993 = vpack.c.b16 %v1897, %v1893
        %v1994 = vpack.c.b16 %v1898, %v1894
        %v1995 = vpack.c.b16 %v1899, %v1895
        %v1996 = vpack.c.b16 %v1904, %v1900
        %v1997 = vpack.c.b16 %v1905, %v1901
        %v1998 = vpack.c.b16 %v1906, %v1902
        %v1999 = vpack.c.b16 %v1907, %v1903
        %v2000 = vpack.c.b16 %v1912, %v1908
        %v2001 = vpack.c.b16 %v1913, %v1909
        %v2002 = vpack.c.b16 %v1914, %v1910
        %v2003 = vpack.c.b16 %v1915, %v1911
        %v2004 = vpack.c.b16 %v1920, %v1916
        %v2005 = vpack.c.b16 %v1921, %v1917
        %v2006 = vpack.c.b16 %v1922, %v1918
        %v2007 = vpack.c.b16 %v1923, %v1919
        %v2008 = vpack.c.b16 %v1928, %v1924
        %v2009 = vpack.c.b16 %v1929, %v1925
        %v2010 = vpack.c.b16 %v1930, %v1926
        %v2011 = vpack.c.b16 %v1931, %v1927
        %v2012 = vpack.c.b16 %v1936, %v1932
        %v2013 = vpack.c.b16 %v1937, %v1933
        %v2014 = vpack.c.b16 %v1938, %v1934
        %v2015 = vpack.c.b16 %v1939, %v1935
        %v2016 = vpack.c.b16 %v1944, %v1940
        %v2017 = vpack.c.b16 %v1945, %v1941
        %v2018 = vpack.c.b16 %v1946, %v1942
        %v2019 = vpack.c.b16 %v1947, %v1943
        %v2020 = vpack.c.b16 %v1952, %v1948
        %v2021 = vpack.c.b16 %v1953, %v1949
        %v2022 = vpack.c.b16 %v1954, %v1950
        %v2023 = vpack.c.b16 %v1955, %v1951
        %v2024 = vpack.c.b16 %v1960, %v1956
        %v2025 = vpack.c.b16 %v1961, %v1957
        %v2026 = vpack.c.b16 %v1962, %v1958
        %v2027 = vpack.c.b16 %v1963, %v1959
        %2092 = vmatpush.bf16.msra.mxu0 %v1992
        %2093 = vmatpush.bf16.msra.mxu0 %v1988
        %2094 = vmatpush.bf16.msra.mxu0 %v1984
        %2095 = vmatpush.bf16.msra.mxu0 %v1980
        %2096 = vmatpush.bf16.msra.mxu0 %v1976
        %2097 = vmatpush.bf16.msra.mxu0 %v1972
        %2098 = vmatpush.bf16.msra.mxu0 %v1968
        %2099 = vmatpush.bf16.msra.mxu0 %v1964
        %2100 = vmatmul.bf16.gmra.mxu0 %v1696
        %v2101 = vpop.f32.mrf.mxu0
        %v2102 = vadd.f32 %v1764, %v2101
        %v2103 = vpop.f32.mrf.mxu0
        %v2104 = vadd.f32 %v1764, %v2103
        %2105 = vdwg.mxu0
        %2106 = vmatpush.bf16.msra.mxu0 %v2024
        %2107 = vmatpush.bf16.msra.mxu0 %v2020
        %2108 = vmatpush.bf16.msra.mxu0 %v2016
        %2109 = vmatpush.bf16.msra.mxu0 %v2012
        %2110 = vmatpush.bf16.msra.mxu0 %v2008
        %2111 = vmatpush.bf16.msra.mxu0 %v2004
        %2112 = vmatpush.bf16.msra.mxu0 %v2000
        %2113 = vmatpush.bf16.msra.mxu0 %v1996
        %2114 = vmatmul.bf16.gmra.mxu0 %v1697
        %v2115 = vpop.f32.mrf.mxu0
        %v2116 = vadd.f32 %v2102, %v2115
        %v2117 = vpop.f32.mrf.mxu0
        %v2118 = vadd.f32 %v2104, %v2117
        %2119 = vdwg.mxu0
        %2120 = vmatpush.bf16.msra.mxu0 %v1993
        %2121 = vmatpush.bf16.msra.mxu0 %v1989
        %2122 = vmatpush.bf16.msra.mxu0 %v1985
        %2123 = vmatpush.bf16.msra.mxu0 %v1981
        %2124 = vmatpush.bf16.msra.mxu0 %v1977
        %2125 = vmatpush.bf16.msra.mxu0 %v1973
        %2126 = vmatpush.bf16.msra.mxu0 %v1969
        %2127 = vmatpush.bf16.msra.mxu0 %v1965
        %2128 = vmatmul.bf16.gmra.mxu0 %v1696
        %v2129 = vpop.f32.mrf.mxu0
        %v2130 = vadd.f32 %v1765, %v2129
        %v2131 = vpop.f32.mrf.mxu0
        %v2132 = vadd.f32 %v1765, %v2131
        %2133 = vdwg.mxu0
        %2134 = vmatpush.bf16.msra.mxu0 %v2025
        %2135 = vmatpush.bf16.msra.mxu0 %v2021
        %2136 = vmatpush.bf16.msra.mxu0 %v2017
        %2137 = vmatpush.bf16.msra.mxu0 %v2013
        %2138 = vmatpush.bf16.msra.mxu0 %v2009
        %2139 = vmatpush.bf16.msra.mxu0 %v2005
        %2140 = vmatpush.bf16.msra.mxu0 %v2001
        %2141 = vmatpush.bf16.msra.mxu0 %v1997
        %2142 = vmatmul.bf16.gmra.mxu0 %v1697
        %v2143 = vpop.f32.mrf.mxu0
        %v2144 = vadd.f32 %v2130, %v2143
        %v2145 = vpop.f32.mrf.mxu0
        %v2146 = vadd.f32 %v2132, %v2145
        %2147 = vdwg.mxu0
        %2148 = vmatpush.bf16.msra.mxu0 %v1994
        %2149 = vmatpush.bf16.msra.mxu0 %v1990
        %2150 = vmatpush.bf16.msra.mxu0 %v1986
        %2151 = vmatpush.bf16.msra.mxu0 %v1982
        %2152 = vmatpush.bf16.msra.mxu0 %v1978
        %2153 = vmatpush.bf16.msra.mxu0 %v1974
        %2154 = vmatpush.bf16.msra.mxu0 %v1970
        %2155 = vmatpush.bf16.msra.mxu0 %v1966
        %2156 = vmatmul.bf16.gmra.mxu0 %v1696
        %v2157 = vpop.f32.mrf.mxu0
        %v2158 = vadd.f32 %v1766, %v2157
        %v2159 = vpop.f32.mrf.mxu0
        %v2160 = vadd.f32 %v1766, %v2159
        %2161 = vdwg.mxu0
        %2162 = vmatpush.bf16.msra.mxu0 %v2026
        %2163 = vmatpush.bf16.msra.mxu0 %v2022
        %2164 = vmatpush.bf16.msra.mxu0 %v2018
        %2165 = vmatpush.bf16.msra.mxu0 %v2014
        %2166 = vmatpush.bf16.msra.mxu0 %v2010
        %2167 = vmatpush.bf16.msra.mxu0 %v2006
        %2168 = vmatpush.bf16.msra.mxu0 %v2002
        %2169 = vmatpush.bf16.msra.mxu0 %v1998
        %2170 = vmatmul.bf16.gmra.mxu0 %v1697
        %v2171 = vpop.f32.mrf.mxu0
        %v2172 = vadd.f32 %v2158, %v2171
        %v2173 = vpop.f32.mrf.mxu0
        %v2174 = vadd.f32 %v2160, %v2173
        %2175 = vdwg.mxu0
        %2176 = vmatpush.bf16.msra.mxu0 %v1995
        %2177 = vmatpush.bf16.msra.mxu0 %v1991
        %2178 = vmatpush.bf16.msra.mxu0 %v1987
        %2179 = vmatpush.bf16.msra.mxu0 %v1983
        %2180 = vmatpush.bf16.msra.mxu0 %v1979
        %2181 = vmatpush.bf16.msra.mxu0 %v1975
        %2182 = vmatpush.bf16.msra.mxu0 %v1971
        %2183 = vmatpush.bf16.msra.mxu0 %v1967
        %2184 = vmatmul.bf16.gmra.mxu0 %v1696
        %v2185 = vpop.f32.mrf.mxu0
        %v2186 = vadd.f32 %v1767, %v2185
        %v2187 = vpop.f32.mrf.mxu0
        %v2188 = vadd.f32 %v1767, %v2187
        %2189 = vdwg.mxu0
        %2190 = vmatpush.bf16.msra.mxu0 %v2027
        %2191 = vmatpush.bf16.msra.mxu0 %v2023
        %2192 = vmatpush.bf16.msra.mxu0 %v2019
        %2193 = vmatpush.bf16.msra.mxu0 %v2015
        %2194 = vmatpush.bf16.msra.mxu0 %v2011
        %2195 = vmatpush.bf16.msra.mxu0 %v2007
        %2196 = vmatpush.bf16.msra.mxu0 %v2003
        %2197 = vmatpush.bf16.msra.mxu0 %v1999
        %2198 = vmatmul.bf16.gmra.mxu0 %v1697
        %v2199 = vpop.f32.mrf.mxu0
        %v2200 = vadd.f32 %v2186, %v2199
        %v2201 = vpop.f32.mrf.mxu0
        %v2202 = vadd.f32 %v2188, %v2201
        %2203 = vdwg.mxu0
        %v2204 = vpack.c.bf16 %v2144, %v2116
        %v2205 = vpack.c.bf16 %v2200, %v2172
        %v2206 = vpack.c.bf16 %v2146, %v2118
        %v2207 = vpack.c.bf16 %v2202, %v2174
        %v2208 = vunpack.c.l.bf16 %v2204
        %v2209 = vunpack.c.h.bf16 %v2204
        %v2210 = vunpack.c.l.bf16 %v2205
        %v2211 = vunpack.c.h.bf16 %v2205
        %v2212 = vunpack.c.l.bf16 %v2206
        %v2213 = vunpack.c.h.bf16 %v2206
        %v2214 = vunpack.c.l.bf16 %v2207
        %v2215 = vunpack.c.h.bf16 %v2207
        %v2216 = vmul.f32 %v2208, 0.5
        %v2217 = vmul.f32 %v2209, 0.5
        %v2218 = vmul.f32 %v2210, 0.5
        %v2219 = vmul.f32 %v2211, 0.5
        %v2220 = vmul.f32 %v2212, 0.5
        %v2221 = vmul.f32 %v2213, 0.5
        %v2222 = vmul.f32 %v2214, 0.5
        %v2223 = vmul.f32 %v2215, 0.5
        %v2224 = vpack.c.bf16 %v2217, %v2216
        %v2225 = vpack.c.bf16 %v2219, %v2218
        %v2226 = vpack.c.bf16 %v2221, %v2220
        %v2227 = vpack.c.bf16 %v2223, %v2222
        %v2228 = vunpack.c.l.bf16 %v2224
        %v2229 = vunpack.c.h.bf16 %v2224
        %v2230 = vunpack.c.l.bf16 %v2225
        %v2231 = vunpack.c.h.bf16 %v2225
        %v2232 = vunpack.c.l.bf16 %v2226
        %v2233 = vunpack.c.h.bf16 %v2226
        %v2234 = vunpack.c.l.bf16 %v2227
        %v2235 = vunpack.c.h.bf16 %v2227
        %v2236 = vtanh.pop %v2228
        %v2237 = vtanh.pop %v2229
        %v2238 = vtanh.pop %v2230
        %v2239 = vtanh.pop %v2231
        %v2240 = vtanh.pop %v2232
        %v2241 = vtanh.pop %v2233
        %v2242 = vtanh.pop %v2234
        %v2243 = vtanh.pop %v2235
        %v2244 = vpack.c.bf16 %v2237, %v2236
        %v2245 = vpack.c.bf16 %v2239, %v2238
        %v2246 = vpack.c.bf16 %v2241, %v2240
        %v2247 = vpack.c.bf16 %v2243, %v2242
        %v2248 = vunpack.c.l.bf16 %v2244
        %v2249 = vunpack.c.h.bf16 %v2244
        %v2250 = vunpack.c.l.bf16 %v2245
        %v2251 = vunpack.c.h.bf16 %v2245
        %v2252 = vunpack.c.l.bf16 %v2246
        %v2253 = vunpack.c.h.bf16 %v2246
        %v2254 = vunpack.c.l.bf16 %v2247
        %v2255 = vunpack.c.h.bf16 %v2247
        %v2256 = vmul.f32 %v2248, 0.5
        %v2257 = vmul.f32 %v2249, 0.5
        %v2258 = vmul.f32 %v2250, 0.5
        %v2259 = vmul.f32 %v2251, 0.5
        %v2260 = vmul.f32 %v2252, 0.5
        %v2261 = vmul.f32 %v2253, 0.5
        %v2262 = vmul.f32 %v2254, 0.5
        %v2263 = vmul.f32 %v2255, 0.5
        %v2264 = vpack.c.bf16 %v2257, %v2256
        %v2265 = vpack.c.bf16 %v2259, %v2258
        %v2266 = vpack.c.bf16 %v2261, %v2260
        %v2267 = vpack.c.bf16 %v2263, %v2262
        %v2268 = vunpack.c.l.bf16 %v2264
        %v2269 = vunpack.c.h.bf16 %v2264
        %v2270 = vunpack.c.l.bf16 %v2265
        %v2271 = vunpack.c.h.bf16 %v2265
        %v2272 = vunpack.c.l.bf16 %v2266
        %v2273 = vunpack.c.h.bf16 %v2266
        %v2274 = vunpack.c.l.bf16 %v2267
        %v2275 = vunpack.c.h.bf16 %v2267
        %v2276 = vadd.f32 %v2268, 0.5
        %v2277 = vadd.f32 %v2269, 0.5
        %v2278 = vadd.f32 %v2270, 0.5
        %v2279 = vadd.f32 %v2271, 0.5
        %v2280 = vadd.f32 %v2272, 0.5
        %v2281 = vadd.f32 %v2273, 0.5
        %v2282 = vadd.f32 %v2274, 0.5
        %v2283 = vadd.f32 %v2275, 0.5
        %v2284 = vpack.c.bf16 %v2280, %v2276
        %v2285 = vpack.c.bf16 %v2281, %v2277
        %v2286 = vpack.c.bf16 %v2282, %v2278
        %v2287 = vpack.c.bf16 %v2283, %v2279
        %v2288 = vld [vmem:[#allocation16] sm:$0xf]
        %v2289 = vld [vmem:[#allocation16 + $0x4] sm:$0xf]
        %v2290 = vld [vmem:[#allocation16 + $0x8] sm:$0xf]
        %v2291 = vld [vmem:[#allocation16 + $0xc] sm:$0xf]
        %v2292 = vld [vmem:[#allocation16 + $0x10] sm:$0xf]
        %v2293 = vld [vmem:[#allocation16 + $0x14] sm:$0xf]
        %v2294 = vld [vmem:[#allocation16 + $0x18] sm:$0xf]
        %v2295 = vld [vmem:[#allocation16 + $0x1c] sm:$0xf]
        %v2296 = vld [vmem:[#allocation16 + $0x20] sm:$0xf]
        %v2297 = vld [vmem:[#allocation16 + $0x24] sm:$0xf]
        %v2298 = vld [vmem:[#allocation16 + $0x28] sm:$0xf]
        %v2299 = vld [vmem:[#allocation16 + $0x2c] sm:$0xf]
        %v2300 = vld [vmem:[#allocation16 + $0x30] sm:$0xf]
        %v2301 = vld [vmem:[#allocation16 + $0x34] sm:$0xf]
        %v2302 = vld [vmem:[#allocation16 + $0x38] sm:$0xf]
        %v2303 = vld [vmem:[#allocation16 + $0x3c] sm:$0xf]
        %v2304 = vld [vmem:[#allocation16 + $0x40] sm:$0xf]
        %v2305 = vld [vmem:[#allocation16 + $0x44] sm:$0xf]
        %v2306 = vld [vmem:[#allocation16 + $0x48] sm:$0xf]
        %v2307 = vld [vmem:[#allocation16 + $0x4c] sm:$0xf]
        %v2308 = vld [vmem:[#allocation16 + $0x50] sm:$0xf]
        %v2309 = vld [vmem:[#allocation16 + $0x54] sm:$0xf]
        %v2310 = vld [vmem:[#allocation16 + $0x58] sm:$0xf]
        %v2311 = vld [vmem:[#allocation16 + $0x5c] sm:$0xf]
        %v2312 = vld [vmem:[#allocation16 + $0x60] sm:$0xf]
        %v2313 = vld [vmem:[#allocation16 + $0x64] sm:$0xf]
        %v2314 = vld [vmem:[#allocation16 + $0x68] sm:$0xf]
        %v2315 = vld [vmem:[#allocation16 + $0x6c] sm:$0xf]
        %v2316 = vld [vmem:[#allocation16 + $0x70] sm:$0xf]
        %v2317 = vld [vmem:[#allocation16 + $0x74] sm:$0xf]
        %v2318 = vld [vmem:[#allocation16 + $0x78] sm:$0xf]
        %v2319 = vld [vmem:[#allocation16 + $0x7c] sm:$0xf]
        %v2320 = vld [vmem:[#allocation16 + $0x80] sm:$0xf]
        %v2321 = vld [vmem:[#allocation16 + $0x84] sm:$0xf]
        %v2322 = vld [vmem:[#allocation16 + $0x88] sm:$0xf]
        %v2323 = vld [vmem:[#allocation16 + $0x8c] sm:$0xf]
        %v2324 = vld [vmem:[#allocation16 + $0x90] sm:$0xf]
        %v2325 = vld [vmem:[#allocation16 + $0x94] sm:$0xf]
        %v2326 = vld [vmem:[#allocation16 + $0x98] sm:$0xf]
        %v2327 = vld [vmem:[#allocation16 + $0x9c] sm:$0xf]
        %v2328 = vld [vmem:[#allocation16 + $0xa0] sm:$0xf]
        %v2329 = vld [vmem:[#allocation16 + $0xa4] sm:$0xf]
        %v2330 = vld [vmem:[#allocation16 + $0xa8] sm:$0xf]
        %v2331 = vld [vmem:[#allocation16 + $0xac] sm:$0xf]
        %v2332 = vld [vmem:[#allocation16 + $0xb0] sm:$0xf]
        %v2333 = vld [vmem:[#allocation16 + $0xb4] sm:$0xf]
        %v2334 = vld [vmem:[#allocation16 + $0xb8] sm:$0xf]
        %v2335 = vld [vmem:[#allocation16 + $0xbc] sm:$0xf]
        %v2336 = vld [vmem:[#allocation16 + $0xc0] sm:$0xf]
        %v2337 = vld [vmem:[#allocation16 + $0xc4] sm:$0xf]
        %v2338 = vld [vmem:[#allocation16 + $0xc8] sm:$0xf]
        %v2339 = vld [vmem:[#allocation16 + $0xcc] sm:$0xf]
        %v2340 = vld [vmem:[#allocation16 + $0xd0] sm:$0xf]
        %v2341 = vld [vmem:[#allocation16 + $0xd4] sm:$0xf]
        %v2342 = vld [vmem:[#allocation16 + $0xd8] sm:$0xf]
        %v2343 = vld [vmem:[#allocation16 + $0xdc] sm:$0xf]
        %v2344 = vld [vmem:[#allocation16 + $0xe0] sm:$0xf]
        %v2345 = vld [vmem:[#allocation16 + $0xe4] sm:$0xf]
        %v2346 = vld [vmem:[#allocation16 + $0xe8] sm:$0xf]
        %v2347 = vld [vmem:[#allocation16 + $0xec] sm:$0xf]
        %v2348 = vld [vmem:[#allocation16 + $0xf0] sm:$0xf]
        %v2349 = vld [vmem:[#allocation16 + $0xf4] sm:$0xf]
        %v2350 = vld [vmem:[#allocation16 + $0xf8] sm:$0xf]
        %v2351 = vld [vmem:[#allocation16 + $0xfc] sm:$0xf]
        %v2352 = vld [vmem:[%s12] sm:$0x1]
        %v2354 = vperm.slane %v2352, 0
        %v2420 = vunpack.c.l.b16 %v2288
        %v2421 = vunpack.c.l.b16 %v2289
        %v2422 = vunpack.c.l.b16 %v2290
        %v2423 = vunpack.c.l.b16 %v2291
        %v2424 = vunpack.c.l.b16 %v2292
        %v2425 = vunpack.c.l.b16 %v2293
        %v2426 = vunpack.c.l.b16 %v2294
        %v2427 = vunpack.c.l.b16 %v2295
        %v2428 = vunpack.c.l.b16 %v2296
        %v2429 = vunpack.c.l.b16 %v2297
        %v2430 = vunpack.c.l.b16 %v2298
        %v2431 = vunpack.c.l.b16 %v2299
        %v2432 = vunpack.c.l.b16 %v2300
        %v2433 = vunpack.c.l.b16 %v2301
        %v2434 = vunpack.c.l.b16 %v2302
        %v2435 = vunpack.c.l.b16 %v2303
        %v2436 = vunpack.c.l.b16 %v2304
        %v2437 = vunpack.c.l.b16 %v2305
        %v2438 = vunpack.c.l.b16 %v2306
        %v2439 = vunpack.c.l.b16 %v2307
        %v2440 = vunpack.c.l.b16 %v2308
        %v2441 = vunpack.c.l.b16 %v2309
        %v2442 = vunpack.c.l.b16 %v2310
        %v2443 = vunpack.c.l.b16 %v2311
        %v2444 = vunpack.c.l.b16 %v2312
        %v2445 = vunpack.c.l.b16 %v2313
        %v2446 = vunpack.c.l.b16 %v2314
        %v2447 = vunpack.c.l.b16 %v2315
        %v2448 = vunpack.c.l.b16 %v2316
        %v2449 = vunpack.c.l.b16 %v2317
        %v2450 = vunpack.c.l.b16 %v2318
        %v2451 = vunpack.c.l.b16 %v2319
        %v2452 = vunpack.c.l.b16 %v2320
        %v2453 = vunpack.c.l.b16 %v2321
        %v2454 = vunpack.c.l.b16 %v2322
        %v2455 = vunpack.c.l.b16 %v2323
        %v2456 = vunpack.c.l.b16 %v2324
        %v2457 = vunpack.c.l.b16 %v2325
        %v2458 = vunpack.c.l.b16 %v2326
        %v2459 = vunpack.c.l.b16 %v2327
        %v2460 = vunpack.c.l.b16 %v2328
        %v2461 = vunpack.c.l.b16 %v2329
        %v2462 = vunpack.c.l.b16 %v2330
        %v2463 = vunpack.c.l.b16 %v2331
        %v2464 = vunpack.c.l.b16 %v2332
        %v2465 = vunpack.c.l.b16 %v2333
        %v2466 = vunpack.c.l.b16 %v2334
        %v2467 = vunpack.c.l.b16 %v2335
        %v2468 = vunpack.c.l.b16 %v2336
        %v2469 = vunpack.c.l.b16 %v2337
        %v2470 = vunpack.c.l.b16 %v2338
        %v2471 = vunpack.c.l.b16 %v2339
        %v2472 = vunpack.c.l.b16 %v2340
        %v2473 = vunpack.c.l.b16 %v2341
        %v2474 = vunpack.c.l.b16 %v2342
        %v2475 = vunpack.c.l.b16 %v2343
        %v2476 = vunpack.c.l.b16 %v2344
        %v2477 = vunpack.c.l.b16 %v2345
        %v2478 = vunpack.c.l.b16 %v2346
        %v2479 = vunpack.c.l.b16 %v2347
        %v2480 = vunpack.c.l.b16 %v2348
        %v2481 = vunpack.c.l.b16 %v2349
        %v2482 = vunpack.c.l.b16 %v2350
        %v2483 = vunpack.c.l.b16 %v2351
        %v2484 = vpack.c.b16 %v2421, %v2420
        %v2485 = vpack.c.b16 %v2423, %v2422
        %v2486 = vpack.c.b16 %v2425, %v2424
        %v2487 = vpack.c.b16 %v2427, %v2426
        %v2488 = vpack.c.b16 %v2429, %v2428
        %v2489 = vpack.c.b16 %v2431, %v2430
        %v2490 = vpack.c.b16 %v2433, %v2432
        %v2491 = vpack.c.b16 %v2435, %v2434
        %v2492 = vpack.c.b16 %v2437, %v2436
        %v2493 = vpack.c.b16 %v2439, %v2438
        %v2494 = vpack.c.b16 %v2441, %v2440
        %v2495 = vpack.c.b16 %v2443, %v2442
        %v2496 = vpack.c.b16 %v2445, %v2444
        %v2497 = vpack.c.b16 %v2447, %v2446
        %v2498 = vpack.c.b16 %v2449, %v2448
        %v2499 = vpack.c.b16 %v2451, %v2450
        %v2500 = vpack.c.b16 %v2453, %v2452
        %v2501 = vpack.c.b16 %v2455, %v2454
        %v2502 = vpack.c.b16 %v2457, %v2456
        %v2503 = vpack.c.b16 %v2459, %v2458
        %v2504 = vpack.c.b16 %v2461, %v2460
        %v2505 = vpack.c.b16 %v2463, %v2462
        %v2506 = vpack.c.b16 %v2465, %v2464
        %v2507 = vpack.c.b16 %v2467, %v2466
        %v2508 = vpack.c.b16 %v2469, %v2468
        %v2509 = vpack.c.b16 %v2471, %v2470
        %v2510 = vpack.c.b16 %v2473, %v2472
        %v2511 = vpack.c.b16 %v2475, %v2474
        %v2512 = vpack.c.b16 %v2477, %v2476
        %v2513 = vpack.c.b16 %v2479, %v2478
        %v2514 = vpack.c.b16 %v2481, %v2480
        %v2515 = vpack.c.b16 %v2483, %v2482
        %2548 = vmatpush.bf16.msra.mxu0 %v2491
        %2549 = vmatpush.bf16.msra.mxu0 %v2490
        %2550 = vmatpush.bf16.msra.mxu0 %v2489
        %2551 = vmatpush.bf16.msra.mxu0 %v2488
        %2552 = vmatpush.bf16.msra.mxu0 %v2487
        %2553 = vmatpush.bf16.msra.mxu0 %v2486
        %2554 = vmatpush.bf16.msra.mxu0 %v2485
        %2555 = vmatpush.bf16.msra.mxu0 %v2484
        %2556 = vmatmul.bf16.gmra.mxu0 %v2284
        %v2557 = vpop.f32.mrf.mxu0
        %v2558 = vadd.f32 %v2354, %v2557
        %v2559 = vpop.f32.mrf.mxu0
        %v2560 = vadd.f32 %v2354, %v2559
        %2561 = vdwg.mxu0
        %2562 = vmatpush.bf16.msra.mxu0 %v2499
        %2563 = vmatpush.bf16.msra.mxu0 %v2498
        %2564 = vmatpush.bf16.msra.mxu0 %v2497
        %2565 = vmatpush.bf16.msra.mxu0 %v2496
        %2566 = vmatpush.bf16.msra.mxu0 %v2495
        %2567 = vmatpush.bf16.msra.mxu0 %v2494
        %2568 = vmatpush.bf16.msra.mxu0 %v2493
        %2569 = vmatpush.bf16.msra.mxu0 %v2492
        %2570 = vmatmul.bf16.gmra.mxu0 %v2285
        %v2571 = vpop.f32.mrf.mxu0
        %v2572 = vadd.f32 %v2558, %v2571
        %v2573 = vpop.f32.mrf.mxu0
        %v2574 = vadd.f32 %v2560, %v2573
        %2575 = vdwg.mxu0
        %2576 = vmatpush.bf16.msra.mxu0 %v2507
        %2577 = vmatpush.bf16.msra.mxu0 %v2506
        %2578 = vmatpush.bf16.msra.mxu0 %v2505
        %2579 = vmatpush.bf16.msra.mxu0 %v2504
        %2580 = vmatpush.bf16.msra.mxu0 %v2503
        %2581 = vmatpush.bf16.msra.mxu0 %v2502
        %2582 = vmatpush.bf16.msra.mxu0 %v2501
        %2583 = vmatpush.bf16.msra.mxu0 %v2500
        %2584 = vmatmul.bf16.gmra.mxu0 %v2286
        %v2585 = vpop.f32.mrf.mxu0
        %v2586 = vadd.f32 %v2572, %v2585
        %v2587 = vpop.f32.mrf.mxu0
        %v2588 = vadd.f32 %v2574, %v2587
        %2589 = vdwg.mxu0
        %2590 = vmatpush.bf16.msra.mxu0 %v2515
        %2591 = vmatpush.bf16.msra.mxu0 %v2514
        %2592 = vmatpush.bf16.msra.mxu0 %v2513
        %2593 = vmatpush.bf16.msra.mxu0 %v2512
        %2594 = vmatpush.bf16.msra.mxu0 %v2511
        %2595 = vmatpush.bf16.msra.mxu0 %v2510
        %2596 = vmatpush.bf16.msra.mxu0 %v2509
        %2597 = vmatpush.bf16.msra.mxu0 %v2508
        %2598 = vmatmul.bf16.gmra.mxu0 %v2287
        %v2599 = vpop.f32.mrf.mxu0
        %v2600 = vadd.f32 %v2586, %v2599
        %v2601 = vpop.f32.mrf.mxu0
        %v2602 = vadd.f32 %v2588, %v2601
        %2603 = vdwg.mxu0
        %v2604 = vmul.f32 %v2600, 0.5
        %v2605 = vmul.f32 %v2602, 0.5
        %v2606 = vtanh.pop %v2604
        %v2607 = vtanh.pop %v2605
        %v2608 = vmul.f32 %v2606, 0.5
        %v2609 = vmul.f32 %v2607, 0.5
        %v2610 = vadd.f32 %v2608, 0.5
        %v2611 = vadd.f32 %v2609, 0.5
        %2612 = vst [vmem:[%s588] sm:$0xff] %v2610
        %2613 = vst [vmem:[%s588 + $0x8] sm:$0xff] %v2611
        %s2614 = sand.u32 %s320, 1
        %s2615 = scalar_lea.sflag [#allocation4], %s2614
        %s2616 = sand.u32 %s320, 1
        %s2617 = smul.addr %s2616, 16
        %s2618 = scalar_lea.vmem [#allocation17], %s2617
        // Predicated region
        $region109: #{tpu_custom_call.1} parent=71 // pred_check
          %p2619 = pneg %p330
        $region110: #{tpu_custom_call.1} parent=71 // pred_check_branch
          %2621 = sbr.rel (%p2619) target = $region112
        $region111: #{tpu_custom_call.1} parent=71 // pred_region
          %s2622 = smul.u32 2, %s34
          %2624 = vsyncadd %s2615, 0
          %s2625 = smul.addr %s2622, 8
          %s2626 = scalar_lea.hbm %s13, %s2625
          %s2627 = sshll.u32 %s2618, 4
          %s2628 = int_to_ptr.vmem [resolvable:$true] %s2627
          %s2629 = sshll.u32 %s2626, 4
          %s2630 = int_to_ptr.hbm [resolvable:$true] %s2629
          %2635 = dma.vmem_to_hbm [thread:$0]  %s2628, 256, %s2630, %s2615, 128, 128, 8
        $region112: #{tpu_custom_call.1} parent=71 // pred_fallthru
          _
      $region72: #{tpu_custom_call.1} parent=5 // pred_fallthru
        _
      %p2636 = scmp.le.s32.totalorder 2, %s29
      // Predicated region
      $region113: #{tpu_custom_call.1} parent=5 // pred_check
        %p2637 = pneg %p2636
      $region114: #{tpu_custom_call.1} parent=5 // pred_check_branch
        %2639 = sbr.rel (%p2637) target = $region116
      $region115: #{tpu_custom_call.1} parent=5 // pred_region
        %s2640 = ssub.s32 %s29, 2
        // Predicated region
        $region117: #{tpu_custom_call.1} parent=115 // pred_check
          %p2641 = pneg %p336
        $region118: #{tpu_custom_call.1} parent=115 // pred_check_branch
          %2643 = sbr.rel (%p2641) target = $region120
        $region119: #{tpu_custom_call.1} parent=115 // pred_region
          %s2644 = sand.u32 %s321, 1
          %s2645 = scalar_lea.sflag [#allocation4], %s2644
          %s2646 = sand.u32 %s321, 1
          %s2647 = smul.addr %s2646, 16
          %s2648 = scalar_lea.vmem [#allocation17], %s2647
          %2650 = dma.done %s2645, 256
        $region120: #{tpu_custom_call.1} parent=115 // pred_fallthru
          _
      $region116: #{tpu_custom_call.1} parent=5 // pred_fallthru
        _
    $region6: #{tpu_custom_call.1} parent=1 // loop_footer
      %s33 = sadd.s32 1, %s29
    $region7: #{tpu_custom_call.1} parent=1 // loop_footer_branch
      %28 = sbr.rel target = $region3
    $region8: #{tpu_custom_call.1} parent=1 // loop_exit
      _
    %2651 = vsyncpa [#allocation3], 1
    %s2652 = scalar_lea.sflag [#allocation3], 1
    %2653 = vsyncpa %s2652, 1
    %2654 = vsyncpa [#allocation6], 1
    %2655 = vsyncpa [#allocation9], 1
    %2656 = vsyncpa [#allocation12], 1
    %2657 = vsyncpa [#allocation15], 1
    %2658 = vsyncpa [#allocation4], 1
    %s2659 = scalar_lea.sflag [#allocation4], 1
    %2660 = vsyncpa %s2659, 1

</llo_original>
